<compile_context>
chip_gen: v5e
topology: v5e:2x2
jax: 0.10.0
libtpu: 0.0.40
codegen_flags: <defaults>
</compile_context>

<pallas_src>
import math

import jax
import jax.numpy as jnp
from jax.experimental import pallas as pl
from jax.experimental.pallas import tpu as pltpu


# --------------------------------------------------------------------------
# Kernel body.
# Grid = (batch_tiles, layers, mlp_f_chunks).
# The fp32 residual stream lives in o_ref (resident: its block index ignores
# the layer / F-chunk axes).  xn2_ref caches LayerNorm-2(x) in bf16 for reuse
# by every MLP F-chunk of the current layer.
# --------------------------------------------------------------------------
def _block_body(x_ref, mask_ref,
                ln1g_ref, ln1b_ref, wqkv_ref, bqkv_ref, wo_ref, bo_ref,
                ln2g_ref, ln2b_ref, wfc_ref, bfc_ref, wpr_ref, bpr_ref,
                o_ref, xn2_ref, *, n_head):
    layer = pl.program_id(1)
    fblk = pl.program_id(2)
    Nb, L, E = o_ref.shape
    hd = E // n_head
    T = Nb * L

    # First (layer, f-chunk) for this batch tile: load the residual stream into
    # the resident fp32 output block.
    @pl.when(jnp.logical_and(layer == 0, fblk == 0))
    def _():
        o_ref[...] = x_ref[...]

    def layer_norm(v, g, b):                     # fp32 LayerNorm, eps = 1e-5
        mu = jnp.mean(v, axis=-1, keepdims=True)
        c = v - mu
        var = jnp.mean(c * c, axis=-1, keepdims=True)
        return c * jax.lax.rsqrt(var + 1e-5) * g + b

    # ------------- attention branch + LN2 (first F-chunk of each layer) -------
    @pl.when(fblk == 0)
    def _():
        x = o_ref[...].reshape(T, E)             # fp32 residual stream
        xn = layer_norm(x, ln1g_ref[...], ln1b_ref[...]).astype(jnp.bfloat16)

        # Fused QKV projection: ONE (T, E) @ (E, 3E) matmul (bf16 operands,
        # fp32 accumulate).  1/sqrt(head_dim) is pre-folded into the Q columns.
        qkv = jnp.dot(xn, wqkv_ref[...],
                      preferred_element_type=jnp.float32) + bqkv_ref[...]
        q3 = qkv[:, 0:E].astype(jnp.bfloat16).reshape(Nb, L, E)
        k3 = qkv[:, E:2 * E].astype(jnp.bfloat16).reshape(Nb, L, E)
        v3 = qkv[:, 2 * E:3 * E].astype(jnp.bfloat16).reshape(Nb, L, E)

        wo = wo_ref[...]                         # (E, E) bf16
        attn = jnp.zeros((T, E), jnp.float32)
        # Per-head attention, batched over the Nb batch elements of the tile
        # (single leading batch dim -> one batched MXU einsum per head; no
        #  H*Nb slice/stack copies).
        # TODO(synk): K=E single out-proj matmul blocked on Mosaic 4-D
        # transpose / unaligned lane-concat lowering; accumulating per head.
        for h in range(n_head):
            sl = slice(h * hd, (h + 1) * hd)
            qh, kh, vh = q3[:, :, sl], k3[:, :, sl], v3[:, :, sl]
            s = jnp.einsum("bqd,bkd->bqk", qh, kh,
                           preferred_element_type=jnp.float32)      # (Nb, L, L)
            if mask_ref is not None:
                s = s + mask_ref[...]
            s = s - jnp.max(s, axis=-1, keepdims=True)
            p = jnp.exp(s)
            p = p * pl.reciprocal(jnp.sum(p, axis=-1, keepdims=True),
                                  approx=True)
            ctx = jnp.einsum("bqk,bkd->bqd", p.astype(jnp.bfloat16), vh,
                             preferred_element_type=jnp.float32)    # (Nb, L, hd)
            attn = attn + jnp.dot(ctx.reshape(T, hd).astype(jnp.bfloat16),
                                  wo[sl, :],
                                  preferred_element_type=jnp.float32)

        x = x + attn + bo_ref[...]
        # LN2 once per layer; the bf16 result is reused by every MLP F-chunk.
        xn2_ref[...] = layer_norm(x, ln2g_ref[...],
                                  ln2b_ref[...]).astype(jnp.bfloat16)
        # Commit post-attention residual (+ c_proj bias, added once -- the MLP
        # partial sums are commutative) into the resident output block.
        o_ref[...] = (x + bpr_ref[...]).reshape(Nb, L, E)

    # ------------- MLP branch: one F-chunk of c_fc / c_proj per grid step -----
    h1 = jnp.dot(xn2_ref[...], wfc_ref[...],
                 preferred_element_type=jnp.float32) + bfc_ref[...]
    h1 = h1 * jax.nn.sigmoid(1.702 * h1)          # QuickGELU (fp32)
    part = jnp.dot(h1.astype(jnp.bfloat16), wpr_ref[...],
                   preferred_element_type=jnp.float32)
    o_ref[...] = o_ref[...] + part.reshape(Nb, L, E)


# --------------------------------------------------------------------------
# Wrapper helpers
# --------------------------------------------------------------------------
def _vmem_capacity_bytes():
    try:
        return int(pltpu.get_tpu_info().vmem_capacity_bytes)
    except Exception:
        return 64 << 20          # conservative: v7x per-TensorCore VMEM


def _pick_batch_block(N, L, max_tokens=1024):
    """Batch elements per grid step: big tiles amortize weight re-streaming,
    but keep >= 2 tiles so both TensorCores of a megacore get work."""
    divisors = [d for d in range(1, N + 1) if N % d == 0]
    good = [d for d in divisors if d * L <= max_tokens] or [1]
    two_plus = [d for d in good if N // d >= 2]
    return max(two_plus) if two_plus else max(good)


def _pick_f_block(E, F, vmem_cap, override=None):
    """F-chunk size for streaming the MLP weights (largest that keeps the
    double-buffered per-layer weight footprint well inside VMEM)."""
    if override is not None:
        assert F % override == 0 and (override % 128 == 0 or override == F)
        return override
    budget = int(0.45 * vmem_cap)
    best = F
    for nf in (1, 2, 4, 8, 16):
        if F % nf:
            continue
        fc = F // nf
        if fc != F and fc % 128:
            continue
        best = fc
        w_bytes = 2 * 2 * (4 * E * E + 2 * E * fc)   # double-buffered bf16
        if w_bytes <= budget:
            return fc
    return best


def _vmem_limit_bytes(E, F, Fc, L, Nb, n_head, has_mask, vmem_cap):
    T = Nb * L
    weights = 2 * 2 * (4 * E * E + 2 * E * Fc)       # double-buffered bf16 weights
    vectors = 2 * 4 * (10 * E + Fc)                  # biases / LN params (fp32)
    streams = 4 * 4 * T * E                          # x blocks + resident output
    acts = 4 * T * (6 * E + 2 * Fc) + 2 * T * E      # qkv / attn / mlp + bf16 LN2
    scores = 3 * 4 * Nb * L * L                      # one head's scores/probs live
    mask = 4 * L * L if has_mask else 0
    total = weights + vectors + streams + acts + scores + mask + (8 << 20)
    hi = max(32 << 20, vmem_cap - (8 << 20))         # leave compiler headroom
    return int(min(hi, max(total, 32 << 20)))


def transformer_forward(x_lne, params, n_head, attn_mask=None, mlp_block_f=None):
    """x_lne: (seq, batch, width) fp32 -> (seq, batch, width) fp32."""
    L, N, E = x_lne.shape
    layers = params["wqkv"].shape[0]
    F = params["wfc"].shape[2]
    assert E % n_head == 0
    has_mask = attn_mask is not None
    vmem_cap = _vmem_capacity_bytes()

    x_nle = jnp.transpose(x_lne.astype(jnp.float32), (1, 0, 2))   # once per forward
    Nb = _pick_batch_block(N, L)
    n_tiles = N // Nb
    Fc = _pick_f_block(E, F, vmem_cap, override=mlp_block_f)
    nf = F // Fc

    def pspec(d0, d1):      # per-layer parameter selected by the layer grid axis
        return pl.BlockSpec((None, d0, d1), lambda n, l, f: (l, 0, 0))

    in_specs = [pl.BlockSpec((Nb, L, E), lambda n, l, f: (n, 0, 0))]
    inputs = [x_nle]
    if has_mask:
        # grid-invariant: fetched once (block index never changes)
        in_specs.append(pl.BlockSpec((L, L), lambda n, l, f: (0, 0)))
        inputs.append(attn_mask.astype(jnp.float32))
    in_specs += [
        pspec(1, E), pspec(1, E),                                   # ln_1
        pspec(E, 3 * E), pspec(1, 3 * E),                           # fused W_qkv / b_qkv
        pspec(E, E), pspec(1, E),                                   # out_proj
        pspec(1, E), pspec(1, E),                                   # ln_2
        pl.BlockSpec((None, E, Fc), lambda n, l, f: (l, 0, f)),     # c_fc.weight (F-chunk)
        pl.BlockSpec((None, 1, Fc), lambda n, l, f: (l, 0, f)),     # c_fc.bias   (F-chunk)
        pl.BlockSpec((None, Fc, E), lambda n, l, f: (l, f, 0)),     # c_proj.weight (F-chunk)
        pspec(1, E),                                                # c_proj.bias
    ]
    inputs += [params[k] for k in
               ("ln1_g", "ln1_b", "wqkv", "bqkv", "wo", "bo",
                "ln2_g", "ln2_b", "wfc", "bfc", "wproj", "bproj")]

    if has_mask:
        def kernel(x_ref, mask_ref, *rest):
            _block_body(x_ref, mask_ref, *rest, n_head=n_head)
    else:
        def kernel(x_ref, *rest):
            _block_body(x_ref, None, *rest, n_head=n_head)

    hd = E // n_head
    cost = pl.CostEstimate(
        flops=int(2 * layers * N * L * (4 * E * E + 2 * E * F)
                  + 4 * layers * N * n_head * L * L * hd),
        transcendentals=int(layers * N * L * (n_head * L + F)),
        bytes_accessed=int(layers * n_tiles * 2 * (4 * E * E + 2 * E * F)
                           + 8 * N * L * E),
    )

    out_nle = pl.pallas_call(
        kernel,
        out_shape=jax.ShapeDtypeStruct((N, L, E), jnp.float32),
        grid=(n_tiles, layers, nf),
        in_specs=in_specs,
        out_specs=pl.BlockSpec((Nb, L, E), lambda n, l, f: (n, 0, 0)),
        scratch_shapes=[pltpu.VMEM((Nb * L, E), jnp.bfloat16)],     # cached LN2(x)
        compiler_params=pltpu.CompilerParams(
            dimension_semantics=("parallel", "arbitrary", "arbitrary"),
            vmem_limit_bytes=_vmem_limit_bytes(E, F, Fc, L, Nb, n_head,
                                               has_mask, vmem_cap)),
        cost_estimate=cost,
    )(*inputs)
    return jnp.transpose(out_nle, (1, 0, 2))


# --------------------------------------------------------------------------
# Deterministic synthetic parameters, already "prepared" for the kernel:
#   - Linear weights transposed to input-major (x @ W), stored in bf16,
#   - wq|wk|wv and the biases fused into one (E, 3E)/(1, 3E) tensor with
#     1/sqrt(head_dim) folded into the Q columns,
#   - biases / LayerNorm params in fp32, stacked with a leading `layers` axis.
# Shapes mirror nn.MultiheadAttention / the CLIP MLP exactly.
# --------------------------------------------------------------------------
def init_params(key, width, layers, heads):
    E, F = width, 4 * width
    hd = E // heads
    scale = 1.0 / math.sqrt(hd)
    std = E ** -0.5
    names = ("ln1_g", "ln1_b", "wqkv", "bqkv", "wo", "bo",
             "ln2_g", "ln2_b", "wfc", "bfc", "wproj", "bproj")
    acc = {k: [] for k in names}
    for _ in range(layers):
        key, *ks = jax.random.split(key, 13)
        ks = iter(ks)
        in_w = std * jax.random.normal(next(ks), (3 * E, E), jnp.float32)   # in_proj_weight
        in_b = 0.02 * jax.random.normal(next(ks), (3 * E,), jnp.float32)    # in_proj_bias
        out_w = std * jax.random.normal(next(ks), (E, E), jnp.float32)      # out_proj.weight
        out_b = 0.02 * jax.random.normal(next(ks), (E,), jnp.float32)
        fc_w = std * jax.random.normal(next(ks), (F, E), jnp.float32)       # c_fc.weight
        fc_b = 0.02 * jax.random.normal(next(ks), (F,), jnp.float32)
        pr_w = (F ** -0.5) * jax.random.normal(next(ks), (E, F), jnp.float32)  # c_proj.weight
        pr_b = 0.02 * jax.random.normal(next(ks), (E,), jnp.float32)
        g1 = 1.0 + 0.1 * jax.random.normal(next(ks), (E,), jnp.float32)
        b1 = 0.05 * jax.random.normal(next(ks), (E,), jnp.float32)
        g2 = 1.0 + 0.1 * jax.random.normal(next(ks), (E,), jnp.float32)
        b2 = 0.05 * jax.random.normal(next(ks), (E,), jnp.float32)

        wq = in_w[:E].T * scale            # scale folded into Q weight / bias
        wk = in_w[E:2 * E].T
        wv = in_w[2 * E:].T
        bq = in_b[:E] * scale
        wqkv = jnp.concatenate([wq, wk, wv], axis=1).astype(jnp.bfloat16)   # (E, 3E)
        bqkv = jnp.concatenate([bq, in_b[E:2 * E], in_b[2 * E:]]).reshape(1, 3 * E)

        acc["ln1_g"].append(g1.reshape(1, E)); acc["ln1_b"].append(b1.reshape(1, E))
        acc["wqkv"].append(wqkv); acc["bqkv"].append(bqkv)
        acc["wo"].append(out_w.T.astype(jnp.bfloat16)); acc["bo"].append(out_b.reshape(1, E))
        acc["ln2_g"].append(g2.reshape(1, E)); acc["ln2_b"].append(b2.reshape(1, E))
        acc["wfc"].append(fc_w.T.astype(jnp.bfloat16)); acc["bfc"].append(fc_b.reshape(1, F))
        acc["wproj"].append(pr_w.T.astype(jnp.bfloat16)); acc["bproj"].append(pr_b.reshape(1, E))
    return {k: jnp.stack(v, axis=0) for k, v in acc.items()}


# --------------------------------------------------------------------------
# Pure-JAX reference mirroring the PyTorch block semantics (and the kernel's
# bf16-operand / fp32-accumulate matmul numerics) for the correctness check.
# --------------------------------------------------------------------------
def reference_forward(x_lne, sp, n_head, attn_mask=None):
    L, N, E = x_lne.shape
    hd = E // n_head
    layers = sp["wqkv"].shape[0]
    x = jnp.transpose(x_lne.astype(jnp.float32), (1, 0, 2))     # (N, L, E)

    def ln(v, g, b):
        mu = v.mean(-1, keepdims=True)
        var = ((v - mu) ** 2).mean(-1, keepdims=True)
        return (v - mu) * jax.lax.rsqrt(var + 1e-5) * g + b

    def mm(a, w):                                               # bf16 ops, fp32 accum
        return jnp.dot(a.astype(jnp.bfloat16), w, preferred_element_type=jnp.float32)

    for i in range(layers):
        xn = ln(x, sp["ln1_g"][i, 0], sp["ln1_b"][i, 0])
        qkv = mm(xn, sp["wqkv"][i]) + sp["bqkv"][i, 0]
        q, k, v = qkv[..., :E], qkv[..., E:2 * E], qkv[..., 2 * E:]
        qh = q.reshape(N, L, n_head, hd).astype(jnp.bfloat16)
        kh = k.reshape(N, L, n_head, hd).astype(jnp.bfloat16)
        vh = v.reshape(N, L, n_head, hd).astype(jnp.bfloat16)
        s = jnp.einsum("nlhd,nmhd->nhlm", qh, kh, preferred_element_type=jnp.float32)
        if attn_mask is not None:
            s = s + attn_mask
        p = jax.nn.softmax(s, axis=-1)
        ctx = jnp.einsum("nhlm,nmhd->nlhd", p.astype(jnp.bfloat16), vh,
                         preferred_element_type=jnp.float32).reshape(N, L, E)
        x = x + mm(ctx, sp["wo"][i]) + sp["bo"][i, 0]
        xn2 = ln(x, sp["ln2_g"][i, 0], sp["ln2_b"][i, 0])
        h = mm(xn2, sp["wfc"][i]) + sp["bfc"][i, 0]
        h = h * jax.nn.sigmoid(1.702 * h)
        x = x + mm(h, sp["wproj"][i]) + sp["bproj"][i, 0]
    return jnp.transpose(x, (1, 0, 2))


if __name__ == "__main__":
    # Small shapes consistent with Transformer(width, layers, heads)
    L, N = 8, 2                  # seq, batch (PyTorch MultiheadAttention is seq-first)
    width, layers, heads = 32, 2, 4

    key = jax.random.PRNGKey(0)
    kx, kp = jax.random.split(key)
    x = jax.random.normal(kx, (L, N, width), jnp.float32)
    params = init_params(kp, width, layers, heads)

    # --- no attention mask (e.g. CLIP vision transformer) ---
    out = transformer_forward(x, params, heads, attn_mask=None)
    out = jax.block_until_ready(out)
    ref = reference_forward(x, params, heads, attn_mask=None)
    assert out.shape == (L, N, width)
    assert jnp.allclose(out, ref, atol=2e-2, rtol=2e-2), "mismatch vs JAX reference (no mask)"

    # --- causal additive mask (CLIP text transformer) ---
    causal = jnp.triu(jnp.full((L, L), float("-inf"), jnp.float32), k=1)
    out_m = jax.block_until_ready(transformer_forward(x, params, heads, attn_mask=causal))
    ref_m = reference_forward(x, params, heads, attn_mask=causal)
    assert jnp.allclose(out_m, ref_m, atol=2e-2, rtol=2e-2), "mismatch vs JAX reference (causal)"

    # --- exercise the F-chunked MLP weight streaming path (nf = 2) ---
    width2, heads2 = 64, 4
    kx2, kp2 = jax.random.split(jax.random.PRNGKey(1))
    x2 = jax.random.normal(kx2, (L, N, width2), jnp.float32)
    params2 = init_params(kp2, width2, layers, heads2)
    out2 = jax.block_until_ready(
        transformer_forward(x2, params2, heads2, attn_mask=None, mlp_block_f=128))
    ref2 = reference_forward(x2, params2, heads2, attn_mask=None)
    assert jnp.allclose(out2, ref2, atol=2e-2, rtol=2e-2), "mismatch vs JAX reference (F-chunked)"

    print("KERNEL_OK")
</pallas_src>

<mosaic_0001>
module attributes {stable_mosaic.version = 11 : i64} {
  func.func @kernel(%arg0: i32, %arg1: i32, %arg2: i32, %arg3: memref<1x8x32xf32, #tpu.memory_space<vmem>>, %arg4: memref<1x1x32xf32, #tpu.memory_space<vmem>>, %arg5: memref<1x1x32xf32, #tpu.memory_space<vmem>>, %arg6: memref<1x32x96xbf16, #tpu.memory_space<vmem>>, %arg7: memref<1x1x96xf32, #tpu.memory_space<vmem>>, %arg8: memref<1x32x32xbf16, #tpu.memory_space<vmem>>, %arg9: memref<1x1x32xf32, #tpu.memory_space<vmem>>, %arg10: memref<1x1x32xf32, #tpu.memory_space<vmem>>, %arg11: memref<1x1x32xf32, #tpu.memory_space<vmem>>, %arg12: memref<1x32x128xbf16, #tpu.memory_space<vmem>>, %arg13: memref<1x1x128xf32, #tpu.memory_space<vmem>>, %arg14: memref<1x128x32xbf16, #tpu.memory_space<vmem>>, %arg15: memref<1x1x32xf32, #tpu.memory_space<vmem>>, %arg16: memref<1x8x32xf32, #tpu.memory_space<vmem>>, %arg17: memref<8x32xbf16, #tpu.memory_space<vmem>>) attributes {dimension_semantics = [#tpu.dimension_semantics<parallel>, #tpu.dimension_semantics<arbitrary>, #tpu.dimension_semantics<arbitrary>], iteration_bounds = array<i64: 2, 2, 1>, scalar_prefetch = 0 : i64, scratch_operands = 1 : i64, tpu.core_type = #tpu.core_type<tc>, window_params = [{transform_indices = @transform_0, window_bounds = array<i64: 1, 8, 32>}, {transform_indices = @transform_1, window_bounds = array<i64: 1, 1, 32>}, {transform_indices = @transform_2, window_bounds = array<i64: 1, 1, 32>}, {transform_indices = @transform_3, window_bounds = array<i64: 1, 32, 96>}, {transform_indices = @transform_4, window_bounds = array<i64: 1, 1, 96>}, {transform_indices = @transform_5, window_bounds = array<i64: 1, 32, 32>}, {transform_indices = @transform_6, window_bounds = array<i64: 1, 1, 32>}, {transform_indices = @transform_7, window_bounds = array<i64: 1, 1, 32>}, {transform_indices = @transform_8, window_bounds = array<i64: 1, 1, 32>}, {transform_indices = @transform_9, window_bounds = array<i64: 1, 32, 128>}, {transform_indices = @transform_10, window_bounds = array<i64: 1, 1, 128>}, {transform_indices = @transform_11, window_bounds = array<i64: 1, 128, 32>}, {transform_indices = @transform_12, window_bounds = array<i64: 1, 1, 32>}, {transform_indices = @transform_13, window_bounds = array<i64: 1, 8, 32>}]} {
    %c0_i32 = arith.constant 0 : i32
    %0 = arith.cmpi eq, %arg1, %c0_i32 : i32
    %c0_i32_0 = arith.constant 0 : i32
    %1 = arith.cmpi eq, %arg2, %c0_i32_0 : i32
    %2 = arith.andi %0, %1 : i1
    %3 = arith.extui %2 : i1 to i32
    %c0_i32_1 = arith.constant 0 : i32
    %4 = arith.cmpi ne, %3, %c0_i32_1 : i32
    scf.if %4 {
      %c0_23 = arith.constant 0 : index
      %c0_24 = arith.constant 0 : index
      %c0_25 = arith.constant 0 : index
      %32 = vector.load %arg3[%c0_23, %c0_24, %c0_25] : memref<1x8x32xf32, #tpu.memory_space<vmem>>, vector<1x8x32xf32>
      %c0_26 = arith.constant 0 : index
      %c0_27 = arith.constant 0 : index
      %c0_28 = arith.constant 0 : index
      %33 = vector.load %arg16[%c0_26, %c0_27, %c0_28] : memref<1x8x32xf32, #tpu.memory_space<vmem>>, vector<1x8x32xf32>
      tpu.vector_store %arg16[%c0_26, %c0_27, %c0_28], %32 {strides = array<i32>} : memref<1x8x32xf32, #tpu.memory_space<vmem>>, vector<1x8x32xf32>,
    } else {
    }
    %c0_i32_2 = arith.constant 0 : i32
    %5 = arith.cmpi eq, %arg2, %c0_i32_2 : i32
    %6 = arith.extui %5 : i1 to i32
    %c0_i32_3 = arith.constant 0 : i32
    %7 = arith.cmpi ne, %6, %c0_i32_3 : i32
    scf.if %7 {
      %c0_23 = arith.constant 0 : index
      %c0_24 = arith.constant 0 : index
      %c0_25 = arith.constant 0 : index
      %32 = vector.load %arg16[%c0_23, %c0_24, %c0_25] : memref<1x8x32xf32, #tpu.memory_space<vmem>>, vector<1x8x32xf32>
      %33 = vector.shape_cast %32 : vector<1x8x32xf32> to vector<8x32xf32>
      %c0_26 = arith.constant 0 : index
      %c0_27 = arith.constant 0 : index
      %c0_28 = arith.constant 0 : index
      %34 = vector.load %arg4[%c0_26, %c0_27, %c0_28] : memref<1x1x32xf32, #tpu.memory_space<vmem>>, vector<1x1x32xf32>
      %35 = vector.shape_cast %34 : vector<1x1x32xf32> to vector<1x32xf32>
      %c0_29 = arith.constant 0 : index
      %c0_30 = arith.constant 0 : index
      %c0_31 = arith.constant 0 : index
      %36 = vector.load %arg5[%c0_29, %c0_30, %c0_31] : memref<1x1x32xf32, #tpu.memory_space<vmem>>, vector<1x1x32xf32>
      %37 = vector.shape_cast %36 : vector<1x1x32xf32> to vector<1x32xf32>
      %cst_32 = arith.constant dense<0.000000e+00> : vector<8xf32>
      %38 = vector.multi_reduction <add>, %33, %cst_32 [1] : vector<8x32xf32> to vector<8xf32>
      %39 = vector.shape_cast %38 : vector<8xf32> to vector<8x1xf32>
      %cst_33 = arith.constant 3.200000e+01 : f32
      %40 = vector.broadcast %cst_33 : f32 to vector<8x1xf32>
      %41 = arith.divf %39, %40 : vector<8x1xf32>
      %42 = vector.broadcast %41 : vector<8x1xf32> to vector<8x32xf32>
      %43 = arith.subf %33, %42 : vector<8x32xf32>
      %44 = arith.mulf %43, %43 : vector<8x32xf32>
      %cst_34 = arith.constant dense<0.000000e+00> : vector<8xf32>
      %45 = vector.multi_reduction <add>, %44, %cst_34 [1] : vector<8x32xf32> to vector<8xf32>
      %46 = vector.shape_cast %45 : vector<8xf32> to vector<8x1xf32>
      %cst_35 = arith.constant 3.200000e+01 : f32
      %47 = vector.broadcast %cst_35 : f32 to vector<8x1xf32>
      %48 = arith.divf %46, %47 : vector<8x1xf32>
      %cst_36 = arith.constant 9.99999974E-6 : f32
      %49 = vector.broadcast %cst_36 : f32 to vector<8x1xf32>
      %50 = arith.addf %48, %49 : vector<8x1xf32>
      %51 = math.rsqrt %50 : vector<8x1xf32>
      %52 = vector.broadcast %51 : vector<8x1xf32> to vector<8x32xf32>
      %53 = arith.mulf %43, %52 : vector<8x32xf32>
      %54 = vector.broadcast %35 : vector<1x32xf32> to vector<8x32xf32>
      %55 = arith.mulf %53, %54 : vector<8x32xf32>
      %56 = vector.broadcast %37 : vector<1x32xf32> to vector<8x32xf32>
      %57 = arith.addf %55, %56 : vector<8x32xf32>
      %58 = arith.truncf %57 : vector<8x32xf32> to vector<8x32xbf16>
      %c0_37 = arith.constant 0 : index
      %c0_38 = arith.constant 0 : index
      %c0_39 = arith.constant 0 : index
      %59 = vector.load %arg6[%c0_37, %c0_38, %c0_39] : memref<1x32x96xbf16, #tpu.memory_space<vmem>>, vector<1x32x96xbf16>
      %60 = vector.shape_cast %59 : vector<1x32x96xbf16> to vector<32x96xbf16>
      %cst_40 = arith.constant dense<0.000000e+00> : vector<8x96xf32>
      %61 = tpu.matmul %58, %60, %cst_40 {dimension_numbers = #tpu.dot_dimension_numbers<[1], [0], [0], [1], [0, 0, 1, 1], [], []>} : vector<8x32xbf16>, vector<32x96xbf16>, vector<8x96xf32> -> vector<8x96xf32>
      %c0_41 = arith.constant 0 : index
      %c0_42 = arith.constant 0 : index
      %c0_43 = arith.constant 0 : index
      %62 = vector.load %arg7[%c0_41, %c0_42, %c0_43] : memref<1x1x96xf32, #tpu.memory_space<vmem>>, vector<1x1x96xf32>
      %63 = vector.shape_cast %62 : vector<1x1x96xf32> to vector<1x96xf32>
      %64 = vector.broadcast %63 : vector<1x96xf32> to vector<8x96xf32>
      %65 = arith.addf %61, %64 : vector<8x96xf32>
      %66 = vector.extract_strided_slice %65 {offsets = [0, 0], sizes = [8, 32], strides = [1, 1]} : vector<8x96xf32> to vector<8x32xf32>
      %67 = arith.truncf %66 : vector<8x32xf32> to vector<8x32xbf16>
      %68 = vector.shape_cast %67 : vector<8x32xbf16> to vector<1x8x32xbf16>
      %69 = vector.extract_strided_slice %65 {offsets = [0, 32], sizes = [8, 32], strides = [1, 1]} : vector<8x96xf32> to vector<8x32xf32>
      %70 = arith.truncf %69 : vector<8x32xf32> to vector<8x32xbf16>
      %71 = vector.shape_cast %70 : vector<8x32xbf16> to vector<1x8x32xbf16>
      %72 = vector.extract_strided_slice %65 {offsets = [0, 64], sizes = [8, 32], strides = [1, 1]} : vector<8x96xf32> to vector<8x32xf32>
      %73 = arith.truncf %72 : vector<8x32xf32> to vector<8x32xbf16>
      %74 = vector.shape_cast %73 : vector<8x32xbf16> to vector<1x8x32xbf16>
      %c0_44 = arith.constant 0 : index
      %c0_45 = arith.constant 0 : index
      %c0_46 = arith.constant 0 : index
      %75 = vector.load %arg8[%c0_44, %c0_45, %c0_46] : memref<1x32x32xbf16, #tpu.memory_space<vmem>>, vector<1x32x32xbf16>
      %76 = vector.shape_cast %75 : vector<1x32x32xbf16> to vector<32x32xbf16>
      %cst_47 = arith.constant 0.000000e+00 : f32
      %77 = vector.broadcast %cst_47 : f32 to vector<8x32xf32>
      %78 = vector.extract_strided_slice %68 {offsets = [0, 0, 0], sizes = [1, 8, 8], strides = [1, 1, 1]} : vector<1x8x32xbf16> to vector<1x8x8xbf16>
      %79 = vector.extract_strided_slice %71 {offsets = [0, 0, 0], sizes = [1, 8, 8], strides = [1, 1, 1]} : vector<1x8x32xbf16> to vector<1x8x8xbf16>
      %80 = vector.extract_strided_slice %74 {offsets = [0, 0, 0], sizes = [1, 8, 8], strides = [1, 1, 1]} : vector<1x8x32xbf16> to vector<1x8x8xbf16>
      "tpu.trace_start"() <{level = 10 : i32, message = "bqd,bkd->bqk"}> : () -> ()
      %cst_48 = arith.constant dense<0.000000e+00> : vector<1x8x8xf32>
      %81 = tpu.matmul %78, %79, %cst_48 {dimension_numbers = #tpu.dot_dimension_numbers<[2], [2], [1], [1], [0, 0, 0, 1, 1, 1], [0], [0]>} : vector<1x8x8xbf16>, vector<1x8x8xbf16>, vector<1x8x8xf32> -> vector<1x8x8xf32>
      "tpu.trace_stop"() : () -> ()
      %cst_49 = arith.constant dense<0xFF800000> : vector<1x8xf32>
      %82 = vector.multi_reduction <maximumf>, %81, %cst_49 [2] : vector<1x8x8xf32> to vector<1x8xf32>
      %83 = vector.shape_cast %82 : vector<1x8xf32> to vector<1x8x1xf32>
      %84 = vector.broadcast %83 : vector<1x8x1xf32> to vector<1x8x8xf32>
      %85 = arith.subf %81, %84 : vector<1x8x8xf32>
      %86 = math.exp %85 : vector<1x8x8xf32>
      %cst_50 = arith.constant dense<0.000000e+00> : vector<1x8xf32>
      %87 = vector.multi_reduction <add>, %86, %cst_50 [2] : vector<1x8x8xf32> to vector<1x8xf32>
      %88 = vector.shape_cast %87 : vector<1x8xf32> to vector<1x8x1xf32>
      %89 = tpu.reciprocal %88 {approx = true} : vector<1x8x1xf32> -> vector<1x8x1xf32>
      %90 = vector.broadcast %89 : vector<1x8x1xf32> to vector<1x8x8xf32>
      %91 = arith.mulf %86, %90 : vector<1x8x8xf32>
      %92 = arith.truncf %91 : vector<1x8x8xf32> to vector<1x8x8xbf16>
      "tpu.trace_start"() <{level = 10 : i32, message = "bqk,bkd->bqd"}> : () -> ()
      %cst_51 = arith.constant dense<0.000000e+00> : vector<1x8x8xf32>
      %93 = tpu.matmul %92, %80, %cst_51 {dimension_numbers = #tpu.dot_dimension_numbers<[2], [1], [1], [2], [0, 0, 0, 1, 1, 2], [0], [0]>} : vector<1x8x8xbf16>, vector<1x8x8xbf16>, vector<1x8x8xf32> -> vector<1x8x8xf32>
      "tpu.trace_stop"() : () -> ()
      %94 = vector.shape_cast %93 : vector<1x8x8xf32> to vector<8x8xf32>
      %95 = arith.truncf %94 : vector<8x8xf32> to vector<8x8xbf16>
      %96 = vector.extract_strided_slice %76 {offsets = [0, 0], sizes = [8, 32], strides = [1, 1]} : vector<32x32xbf16> to vector<8x32xbf16>
      %cst_52 = arith.constant dense<0.000000e+00> : vector<8x32xf32>
      %97 = tpu.matmul %95, %96, %cst_52 {dimension_numbers = #tpu.dot_dimension_numbers<[1], [0], [0], [1], [0, 0, 1, 1], [], []>} : vector<8x8xbf16>, vector<8x32xbf16>, vector<8x32xf32> -> vector<8x32xf32>
      %98 = arith.addf %77, %97 : vector<8x32xf32>
      %99 = vector.extract_strided_slice %68 {offsets = [0, 0, 8], sizes = [1, 8, 8], strides = [1, 1, 1]} : vector<1x8x32xbf16> to vector<1x8x8xbf16>
      %100 = vector.extract_strided_slice %71 {offsets = [0, 0, 8], sizes = [1, 8, 8], strides = [1, 1, 1]} : vector<1x8x32xbf16> to vector<1x8x8xbf16>
      %101 = vector.extract_strided_slice %74 {offsets = [0, 0, 8], sizes = [1, 8, 8], strides = [1, 1, 1]} : vector<1x8x32xbf16> to vector<1x8x8xbf16>
      "tpu.trace_start"() <{level = 10 : i32, message = "bqd,bkd->bqk"}> : () -> ()
      %cst_53 = arith.constant dense<0.000000e+00> : vector<1x8x8xf32>
      %102 = tpu.matmul %99, %100, %cst_53 {dimension_numbers = #tpu.dot_dimension_numbers<[2], [2], [1], [1], [0, 0, 0, 1, 1, 1], [0], [0]>} : vector<1x8x8xbf16>, vector<1x8x8xbf16>, vector<1x8x8xf32> -> vector<1x8x8xf32>
      "tpu.trace_stop"() : () -> ()
      %cst_54 = arith.constant dense<0xFF800000> : vector<1x8xf32>
      %103 = vector.multi_reduction <maximumf>, %102, %cst_54 [2] : vector<1x8x8xf32> to vector<1x8xf32>
      %104 = vector.shape_cast %103 : vector<1x8xf32> to vector<1x8x1xf32>
      %105 = vector.broadcast %104 : vector<1x8x1xf32> to vector<1x8x8xf32>
      %106 = arith.subf %102, %105 : vector<1x8x8xf32>
      %107 = math.exp %106 : vector<1x8x8xf32>
      %cst_55 = arith.constant dense<0.000000e+00> : vector<1x8xf32>
      %108 = vector.multi_reduction <add>, %107, %cst_55 [2] : vector<1x8x8xf32> to vector<1x8xf32>
      %109 = vector.shape_cast %108 : vector<1x8xf32> to vector<1x8x1xf32>
      %110 = tpu.reciprocal %109 {approx = true} : vector<1x8x1xf32> -> vector<1x8x1xf32>
      %111 = vector.broadcast %110 : vector<1x8x1xf32> to vector<1x8x8xf32>
      %112 = arith.mulf %107, %111 : vector<1x8x8xf32>
      %113 = arith.truncf %112 : vector<1x8x8xf32> to vector<1x8x8xbf16>
      "tpu.trace_start"() <{level = 10 : i32, message = "bqk,bkd->bqd"}> : () -> ()
      %cst_56 = arith.constant dense<0.000000e+00> : vector<1x8x8xf32>
      %114 = tpu.matmul %113, %101, %cst_56 {dimension_numbers = #tpu.dot_dimension_numbers<[2], [1], [1], [2], [0, 0, 0, 1, 1, 2], [0], [0]>} : vector<1x8x8xbf16>, vector<1x8x8xbf16>, vector<1x8x8xf32> -> vector<1x8x8xf32>
      "tpu.trace_stop"() : () -> ()
      %115 = vector.shape_cast %114 : vector<1x8x8xf32> to vector<8x8xf32>
      %116 = arith.truncf %115 : vector<8x8xf32> to vector<8x8xbf16>
      %117 = vector.extract_strided_slice %76 {offsets = [8, 0], sizes = [8, 32], strides = [1, 1]} : vector<32x32xbf16> to vector<8x32xbf16>
      %cst_57 = arith.constant dense<0.000000e+00> : vector<8x32xf32>
      %118 = tpu.matmul %116, %117, %cst_57 {dimension_numbers = #tpu.dot_dimension_numbers<[1], [0], [0], [1], [0, 0, 1, 1], [], []>} : vector<8x8xbf16>, vector<8x32xbf16>, vector<8x32xf32> -> vector<8x32xf32>
      %119 = arith.addf %98, %118 : vector<8x32xf32>
      %120 = vector.extract_strided_slice %68 {offsets = [0, 0, 16], sizes = [1, 8, 8], strides = [1, 1, 1]} : vector<1x8x32xbf16> to vector<1x8x8xbf16>
      %121 = vector.extract_strided_slice %71 {offsets = [0, 0, 16], sizes = [1, 8, 8], strides = [1, 1, 1]} : vector<1x8x32xbf16> to vector<1x8x8xbf16>
      %122 = vector.extract_strided_slice %74 {offsets = [0, 0, 16], sizes = [1, 8, 8], strides = [1, 1, 1]} : vector<1x8x32xbf16> to vector<1x8x8xbf16>
      "tpu.trace_start"() <{level = 10 : i32, message = "bqd,bkd->bqk"}> : () -> ()
      %cst_58 = arith.constant dense<0.000000e+00> : vector<1x8x8xf32>
      %123 = tpu.matmul %120, %121, %cst_58 {dimension_numbers = #tpu.dot_dimension_numbers<[2], [2], [1], [1], [0, 0, 0, 1, 1, 1], [0], [0]>} : vector<1x8x8xbf16>, vector<1x8x8xbf16>, vector<1x8x8xf32> -> vector<1x8x8xf32>
      "tpu.trace_stop"() : () -> ()
      %cst_59 = arith.constant dense<0xFF800000> : vector<1x8xf32>
      %124 = vector.multi_reduction <maximumf>, %123, %cst_59 [2] : vector<1x8x8xf32> to vector<1x8xf32>
      %125 = vector.shape_cast %124 : vector<1x8xf32> to vector<1x8x1xf32>
      %126 = vector.broadcast %125 : vector<1x8x1xf32> to vector<1x8x8xf32>
      %127 = arith.subf %123, %126 : vector<1x8x8xf32>
      %128 = math.exp %127 : vector<1x8x8xf32>
      %cst_60 = arith.constant dense<0.000000e+00> : vector<1x8xf32>
      %129 = vector.multi_reduction <add>, %128, %cst_60 [2] : vector<1x8x8xf32> to vector<1x8xf32>
      %130 = vector.shape_cast %129 : vector<1x8xf32> to vector<1x8x1xf32>
      %131 = tpu.reciprocal %130 {approx = true} : vector<1x8x1xf32> -> vector<1x8x1xf32>
      %132 = vector.broadcast %131 : vector<1x8x1xf32> to vector<1x8x8xf32>
      %133 = arith.mulf %128, %132 : vector<1x8x8xf32>
      %134 = arith.truncf %133 : vector<1x8x8xf32> to vector<1x8x8xbf16>
      "tpu.trace_start"() <{level = 10 : i32, message = "bqk,bkd->bqd"}> : () -> ()
      %cst_61 = arith.constant dense<0.000000e+00> : vector<1x8x8xf32>
      %135 = tpu.matmul %134, %122, %cst_61 {dimension_numbers = #tpu.dot_dimension_numbers<[2], [1], [1], [2], [0, 0, 0, 1, 1, 2], [0], [0]>} : vector<1x8x8xbf16>, vector<1x8x8xbf16>, vector<1x8x8xf32> -> vector<1x8x8xf32>
      "tpu.trace_stop"() : () -> ()
      %136 = vector.shape_cast %135 : vector<1x8x8xf32> to vector<8x8xf32>
      %137 = arith.truncf %136 : vector<8x8xf32> to vector<8x8xbf16>
      %138 = vector.extract_strided_slice %76 {offsets = [16, 0], sizes = [8, 32], strides = [1, 1]} : vector<32x32xbf16> to vector<8x32xbf16>
      %cst_62 = arith.constant dense<0.000000e+00> : vector<8x32xf32>
      %139 = tpu.matmul %137, %138, %cst_62 {dimension_numbers = #tpu.dot_dimension_numbers<[1], [0], [0], [1], [0, 0, 1, 1], [], []>} : vector<8x8xbf16>, vector<8x32xbf16>, vector<8x32xf32> -> vector<8x32xf32>
      %140 = arith.addf %119, %139 : vector<8x32xf32>
      %141 = vector.extract_strided_slice %68 {offsets = [0, 0, 24], sizes = [1, 8, 8], strides = [1, 1, 1]} : vector<1x8x32xbf16> to vector<1x8x8xbf16>
      %142 = vector.extract_strided_slice %71 {offsets = [0, 0, 24], sizes = [1, 8, 8], strides = [1, 1, 1]} : vector<1x8x32xbf16> to vector<1x8x8xbf16>
      %143 = vector.extract_strided_slice %74 {offsets = [0, 0, 24], sizes = [1, 8, 8], strides = [1, 1, 1]} : vector<1x8x32xbf16> to vector<1x8x8xbf16>
      "tpu.trace_start"() <{level = 10 : i32, message = "bqd,bkd->bqk"}> : () -> ()
      %cst_63 = arith.constant dense<0.000000e+00> : vector<1x8x8xf32>
      %144 = tpu.matmul %141, %142, %cst_63 {dimension_numbers = #tpu.dot_dimension_numbers<[2], [2], [1], [1], [0, 0, 0, 1, 1, 1], [0], [0]>} : vector<1x8x8xbf16>, vector<1x8x8xbf16>, vector<1x8x8xf32> -> vector<1x8x8xf32>
      "tpu.trace_stop"() : () -> ()
      %cst_64 = arith.constant dense<0xFF800000> : vector<1x8xf32>
      %145 = vector.multi_reduction <maximumf>, %144, %cst_64 [2] : vector<1x8x8xf32> to vector<1x8xf32>
      %146 = vector.shape_cast %145 : vector<1x8xf32> to vector<1x8x1xf32>
      %147 = vector.broadcast %146 : vector<1x8x1xf32> to vector<1x8x8xf32>
      %148 = arith.subf %144, %147 : vector<1x8x8xf32>
      %149 = math.exp %148 : vector<1x8x8xf32>
      %cst_65 = arith.constant dense<0.000000e+00> : vector<1x8xf32>
      %150 = vector.multi_reduction <add>, %149, %cst_65 [2] : vector<1x8x8xf32> to vector<1x8xf32>
      %151 = vector.shape_cast %150 : vector<1x8xf32> to vector<1x8x1xf32>
      %152 = tpu.reciprocal %151 {approx = true} : vector<1x8x1xf32> -> vector<1x8x1xf32>
      %153 = vector.broadcast %152 : vector<1x8x1xf32> to vector<1x8x8xf32>
      %154 = arith.mulf %149, %153 : vector<1x8x8xf32>
      %155 = arith.truncf %154 : vector<1x8x8xf32> to vector<1x8x8xbf16>
      "tpu.trace_start"() <{level = 10 : i32, message = "bqk,bkd->bqd"}> : () -> ()
      %cst_66 = arith.constant dense<0.000000e+00> : vector<1x8x8xf32>
      %156 = tpu.matmul %155, %143, %cst_66 {dimension_numbers = #tpu.dot_dimension_numbers<[2], [1], [1], [2], [0, 0, 0, 1, 1, 2], [0], [0]>} : vector<1x8x8xbf16>, vector<1x8x8xbf16>, vector<1x8x8xf32> -> vector<1x8x8xf32>
      "tpu.trace_stop"() : () -> ()
      %157 = vector.shape_cast %156 : vector<1x8x8xf32> to vector<8x8xf32>
      %158 = arith.truncf %157 : vector<8x8xf32> to vector<8x8xbf16>
      %159 = vector.extract_strided_slice %76 {offsets = [24, 0], sizes = [8, 32], strides = [1, 1]} : vector<32x32xbf16> to vector<8x32xbf16>
      %cst_67 = arith.constant dense<0.000000e+00> : vector<8x32xf32>
      %160 = tpu.matmul %158, %159, %cst_67 {dimension_numbers = #tpu.dot_dimension_numbers<[1], [0], [0], [1], [0, 0, 1, 1], [], []>} : vector<8x8xbf16>, vector<8x32xbf16>, vector<8x32xf32> -> vector<8x32xf32>
      %161 = arith.addf %140, %160 : vector<8x32xf32>
      %162 = arith.addf %33, %161 : vector<8x32xf32>
      %c0_68 = arith.constant 0 : index
      %c0_69 = arith.constant 0 : index
      %c0_70 = arith.constant 0 : index
      %163 = vector.load %arg9[%c0_68, %c0_69, %c0_70] : memref<1x1x32xf32, #tpu.memory_space<vmem>>, vector<1x1x32xf32>
      %164 = vector.shape_cast %163 : vector<1x1x32xf32> to vector<1x32xf32>
      %165 = vector.broadcast %164 : vector<1x32xf32> to vector<8x32xf32>
      %166 = arith.addf %162, %165 : vector<8x32xf32>
      %c0_71 = arith.constant 0 : index
      %c0_72 = arith.constant 0 : index
      %c0_73 = arith.constant 0 : index
      %167 = vector.load %arg10[%c0_71, %c0_72, %c0_73] : memref<1x1x32xf32, #tpu.memory_space<vmem>>, vector<1x1x32xf32>
      %168 = vector.shape_cast %167 : vector<1x1x32xf32> to vector<1x32xf32>
      %c0_74 = arith.constant 0 : index
      %c0_75 = arith.constant 0 : index
      %c0_76 = arith.constant 0 : index
      %169 = vector.load %arg11[%c0_74, %c0_75, %c0_76] : memref<1x1x32xf32, #tpu.memory_space<vmem>>, vector<1x1x32xf32>
      %170 = vector.shape_cast %169 : vector<1x1x32xf32> to vector<1x32xf32>
      %cst_77 = arith.constant dense<0.000000e+00> : vector<8xf32>
      %171 = vector.multi_reduction <add>, %166, %cst_77 [1] : vector<8x32xf32> to vector<8xf32>
      %172 = vector.shape_cast %171 : vector<8xf32> to vector<8x1xf32>
      %cst_78 = arith.constant 3.200000e+01 : f32
      %173 = vector.broadcast %cst_78 : f32 to vector<8x1xf32>
      %174 = arith.divf %172, %173 : vector<8x1xf32>
      %175 = vector.broadcast %174 : vector<8x1xf32> to vector<8x32xf32>
      %176 = arith.subf %166, %175 : vector<8x32xf32>
      %177 = arith.mulf %176, %176 : vector<8x32xf32>
      %cst_79 = arith.constant dense<0.000000e+00> : vector<8xf32>
      %178 = vector.multi_reduction <add>, %177, %cst_79 [1] : vector<8x32xf32> to vector<8xf32>
      %179 = vector.shape_cast %178 : vector<8xf32> to vector<8x1xf32>
      %cst_80 = arith.constant 3.200000e+01 : f32
      %180 = vector.broadcast %cst_80 : f32 to vector<8x1xf32>
      %181 = arith.divf %179, %180 : vector<8x1xf32>
      %cst_81 = arith.constant 9.99999974E-6 : f32
      %182 = vector.broadcast %cst_81 : f32 to vector<8x1xf32>
      %183 = arith.addf %181, %182 : vector<8x1xf32>
      %184 = math.rsqrt %183 : vector<8x1xf32>
      %185 = vector.broadcast %184 : vector<8x1xf32> to vector<8x32xf32>
      %186 = arith.mulf %176, %185 : vector<8x32xf32>
      %187 = vector.broadcast %168 : vector<1x32xf32> to vector<8x32xf32>
      %188 = arith.mulf %186, %187 : vector<8x32xf32>
      %189 = vector.broadcast %170 : vector<1x32xf32> to vector<8x32xf32>
      %190 = arith.addf %188, %189 : vector<8x32xf32>
      %191 = arith.truncf %190 : vector<8x32xf32> to vector<8x32xbf16>
      %c0_82 = arith.constant 0 : index
      %c0_83 = arith.constant 0 : index
      %192 = vector.load %arg17[%c0_82, %c0_83] : memref<8x32xbf16, #tpu.memory_space<vmem>>, vector<8x32xbf16>
      tpu.vector_store %arg17[%c0_82, %c0_83], %191 {strides = array<i32>} : memref<8x32xbf16, #tpu.memory_space<vmem>>, vector<8x32xbf16>,
      %c0_84 = arith.constant 0 : index
      %c0_85 = arith.constant 0 : index
      %c0_86 = arith.constant 0 : index
      %193 = vector.load %arg15[%c0_84, %c0_85, %c0_86] : memref<1x1x32xf32, #tpu.memory_space<vmem>>, vector<1x1x32xf32>
      %194 = vector.shape_cast %193 : vector<1x1x32xf32> to vector<1x32xf32>
      %195 = vector.broadcast %194 : vector<1x32xf32> to vector<8x32xf32>
      %196 = arith.addf %166, %195 : vector<8x32xf32>
      %197 = vector.shape_cast %196 : vector<8x32xf32> to vector<1x8x32xf32>
      %c0_87 = arith.constant 0 : index
      %c0_88 = arith.constant 0 : index
      %c0_89 = arith.constant 0 : index
      %198 = vector.load %arg16[%c0_87, %c0_88, %c0_89] : memref<1x8x32xf32, #tpu.memory_space<vmem>>, vector<1x8x32xf32>
      tpu.vector_store %arg16[%c0_87, %c0_88, %c0_89], %197 {strides = array<i32>} : memref<1x8x32xf32, #tpu.memory_space<vmem>>, vector<1x8x32xf32>,
    } else {
    }
    %c0 = arith.constant 0 : index
    %c0_4 = arith.constant 0 : index
    %8 = vector.load %arg17[%c0, %c0_4] : memref<8x32xbf16, #tpu.memory_space<vmem>>, vector<8x32xbf16>
    %c0_5 = arith.constant 0 : index
    %c0_6 = arith.constant 0 : index
    %c0_7 = arith.constant 0 : index
    %9 = vector.load %arg12[%c0_5, %c0_6, %c0_7] : memref<1x32x128xbf16, #tpu.memory_space<vmem>>, vector<1x32x128xbf16>
    %10 = vector.shape_cast %9 : vector<1x32x128xbf16> to vector<32x128xbf16>
    %cst = arith.constant dense<0.000000e+00> : vector<8x128xf32>
    %11 = tpu.matmul %8, %10, %cst {dimension_numbers = #tpu.dot_dimension_numbers<[1], [0], [0], [1], [0, 0, 1, 1], [], []>} : vector<8x32xbf16>, vector<32x128xbf16>, vector<8x128xf32> -> vector<8x128xf32>
    %c0_8 = arith.constant 0 : index
    %c0_9 = arith.constant 0 : index
    %c0_10 = arith.constant 0 : index
    %12 = vector.load %arg13[%c0_8, %c0_9, %c0_10] : memref<1x1x128xf32, #tpu.memory_space<vmem>>, vector<1x1x128xf32>
    %13 = vector.shape_cast %12 : vector<1x1x128xf32> to vector<1x128xf32>
    %14 = vector.broadcast %13 : vector<1x128xf32> to vector<8x128xf32>
    %15 = arith.addf %11, %14 : vector<8x128xf32>
    %cst_11 = arith.constant 1.702000e+00 : f32
    %16 = vector.broadcast %cst_11 : f32 to vector<8x128xf32>
    %17 = arith.mulf %16, %15 : vector<8x128xf32>
    %18 = arith.negf %17 : vector<8x128xf32>
    %19 = math.exp %18 : vector<8x128xf32>
    %cst_12 = arith.constant 1.000000e+00 : f32
    %20 = vector.broadcast %cst_12 : f32 to vector<8x128xf32>
    %21 = arith.addf %20, %19 : vector<8x128xf32>
    %22 = arith.divf %20, %21 : vector<8x128xf32>
    %23 = arith.mulf %15, %22 : vector<8x128xf32>
    %24 = arith.truncf %23 : vector<8x128xf32> to vector<8x128xbf16>
    %c0_13 = arith.constant 0 : index
    %c0_14 = arith.constant 0 : index
    %c0_15 = arith.constant 0 : index
    %25 = vector.load %arg14[%c0_13, %c0_14, %c0_15] : memref<1x128x32xbf16, #tpu.memory_space<vmem>>, vector<1x128x32xbf16>
    %26 = vector.shape_cast %25 : vector<1x128x32xbf16> to vector<128x32xbf16>
    %cst_16 = arith.constant dense<0.000000e+00> : vector<8x32xf32>
    %27 = tpu.matmul %24, %26, %cst_16 {dimension_numbers = #tpu.dot_dimension_numbers<[1], [0], [0], [1], [0, 0, 1, 1], [], []>} : vector<8x128xbf16>, vector<128x32xbf16>, vector<8x32xf32> -> vector<8x32xf32>
    %c0_17 = arith.constant 0 : index
    %c0_18 = arith.constant 0 : index
    %c0_19 = arith.constant 0 : index
    %28 = vector.load %arg16[%c0_17, %c0_18, %c0_19] : memref<1x8x32xf32, #tpu.memory_space<vmem>>, vector<1x8x32xf32>
    %29 = vector.shape_cast %27 : vector<8x32xf32> to vector<1x8x32xf32>
    %30 = arith.addf %28, %29 : vector<1x8x32xf32>
    %c0_20 = arith.constant 0 : index
    %c0_21 = arith.constant 0 : index
    %c0_22 = arith.constant 0 : index
    %31 = vector.load %arg16[%c0_20, %c0_21, %c0_22] : memref<1x8x32xf32, #tpu.memory_space<vmem>>, vector<1x8x32xf32>
    tpu.vector_store %arg16[%c0_20, %c0_21, %c0_22], %30 {strides = array<i32>} : memref<1x8x32xf32, #tpu.memory_space<vmem>>, vector<1x8x32xf32>,
    return
  }
  func.func @transform_0(%arg0: i32, %arg1: i32, %arg2: i32) -> (i32, i32, i32) {
    %c0_i32 = arith.constant 0 : i32
    %c0_i32_0 = arith.constant 0 : i32
    %c0_i32_1 = arith.constant 0 : i32
    return %arg0, %c0_i32, %c0_i32_0 : i32, i32, i32
  }
  func.func @transform_1(%arg0: i32, %arg1: i32, %arg2: i32) -> (i32, i32, i32) {
    %c0_i32 = arith.constant 0 : i32
    %c0_i32_0 = arith.constant 0 : i32
    %c0_i32_1 = arith.constant 0 : i32
    return %arg1, %c0_i32, %c0_i32_0 : i32, i32, i32
  }
  func.func @transform_2(%arg0: i32, %arg1: i32, %arg2: i32) -> (i32, i32, i32) {
    %c0_i32 = arith.constant 0 : i32
    %c0_i32_0 = arith.constant 0 : i32
    %c0_i32_1 = arith.constant 0 : i32
    return %arg1, %c0_i32, %c0_i32_0 : i32, i32, i32
  }
  func.func @transform_3(%arg0: i32, %arg1: i32, %arg2: i32) -> (i32, i32, i32) {
    %c0_i32 = arith.constant 0 : i32
    %c0_i32_0 = arith.constant 0 : i32
    %c0_i32_1 = arith.constant 0 : i32
    return %arg1, %c0_i32, %c0_i32_0 : i32, i32, i32
  }
  func.func @transform_4(%arg0: i32, %arg1: i32, %arg2: i32) -> (i32, i32, i32) {
    %c0_i32 = arith.constant 0 : i32
    %c0_i32_0 = arith.constant 0 : i32
    %c0_i32_1 = arith.constant 0 : i32
    return %arg1, %c0_i32, %c0_i32_0 : i32, i32, i32
  }
  func.func @transform_5(%arg0: i32, %arg1: i32, %arg2: i32) -> (i32, i32, i32) {
    %c0_i32 = arith.constant 0 : i32
    %c0_i32_0 = arith.constant 0 : i32
    %c0_i32_1 = arith.constant 0 : i32
    return %arg1, %c0_i32, %c0_i32_0 : i32, i32, i32
  }
  func.func @transform_6(%arg0: i32, %arg1: i32, %arg2: i32) -> (i32, i32, i32) {
    %c0_i32 = arith.constant 0 : i32
    %c0_i32_0 = arith.constant 0 : i32
    %c0_i32_1 = arith.constant 0 : i32
    return %arg1, %c0_i32, %c0_i32_0 : i32, i32, i32
  }
  func.func @transform_7(%arg0: i32, %arg1: i32, %arg2: i32) -> (i32, i32, i32) {
    %c0_i32 = arith.constant 0 : i32
    %c0_i32_0 = arith.constant 0 : i32
    %c0_i32_1 = arith.constant 0 : i32
    return %arg1, %c0_i32, %c0_i32_0 : i32, i32, i32
  }
  func.func @transform_8(%arg0: i32, %arg1: i32, %arg2: i32) -> (i32, i32, i32) {
    %c0_i32 = arith.constant 0 : i32
    %c0_i32_0 = arith.constant 0 : i32
    %c0_i32_1 = arith.constant 0 : i32
    return %arg1, %c0_i32, %c0_i32_0 : i32, i32, i32
  }
  func.func @transform_9(%arg0: i32, %arg1: i32, %arg2: i32) -> (i32, i32, i32) {
    %c0_i32 = arith.constant 0 : i32
    %c0_i32_0 = arith.constant 0 : i32
    return %arg1, %c0_i32, %arg2 : i32, i32, i32
  }
  func.func @transform_10(%arg0: i32, %arg1: i32, %arg2: i32) -> (i32, i32, i32) {
    %c0_i32 = arith.constant 0 : i32
    %c0_i32_0 = arith.constant 0 : i32
    return %arg1, %c0_i32, %arg2 : i32, i32, i32
  }
  func.func @transform_11(%arg0: i32, %arg1: i32, %arg2: i32) -> (i32, i32, i32) {
    %c0_i32 = arith.constant 0 : i32
    %c0_i32_0 = arith.constant 0 : i32
    return %arg1, %arg2, %c0_i32 : i32, i32, i32
  }
  func.func @transform_12(%arg0: i32, %arg1: i32, %arg2: i32) -> (i32, i32, i32) {
    %c0_i32 = arith.constant 0 : i32
    %c0_i32_0 = arith.constant 0 : i32
    %c0_i32_1 = arith.constant 0 : i32
    return %arg1, %c0_i32, %c0_i32_0 : i32, i32, i32
  }
  func.func @transform_13(%arg0: i32, %arg1: i32, %arg2: i32) -> (i32, i32, i32) {
    %c0_i32 = arith.constant 0 : i32
    %c0_i32_0 = arith.constant 0 : i32
    %c0_i32_1 = arith.constant 0 : i32
    return %arg0, %c0_i32, %c0_i32_0 : i32, i32, i32
  }
}

</mosaic_0001>

<llo_original>
// kernel: tpu_custom_call.1
$region0: #{tpu_custom_call.1}
  #allocation0 [shape = 'u32[]', space=smem, size = 0x4, offset = 0x4, fixed_abs, tag = 'smem constant byte address 0x4 - core index']
  #allocation1 [shape = 'u32[72,128]{1,0:T(1,128)}', space=vmem, size = 0x9000, scoped, tag = 'internal scratch']
  #allocation2 [shape = 'bf16[8,32]{1,0:T(8,128)(2,1)}', space=vmem, size = 0x800, scoped, tag = 'scratch operand']
  %s0 = inlined_call_operand.vmem [shape: f32[2,8,32], index: 0, kind: input, shape index: {}]
  %s1 = inlined_call_operand.vmem [shape: f32[2,1,32], index: 1, kind: input, shape index: {}]
  %s2 = inlined_call_operand.vmem [shape: f32[2,1,32], index: 2, kind: input, shape index: {}]
  %s3 = inlined_call_operand.vmem [shape: bf16[2,32,96], index: 3, kind: input, shape index: {}]
  %s4 = inlined_call_operand.vmem [shape: f32[2,1,96], index: 4, kind: input, shape index: {}]
  %s5 = inlined_call_operand.vmem [shape: bf16[2,32,32], index: 5, kind: input, shape index: {}]
  %s6 = inlined_call_operand.vmem [shape: f32[2,1,32], index: 6, kind: input, shape index: {}]
  %s7 = inlined_call_operand.vmem [shape: f32[2,1,32], index: 7, kind: input, shape index: {}]
  %s8 = inlined_call_operand.vmem [shape: f32[2,1,32], index: 8, kind: input, shape index: {}]
  %s9 = inlined_call_operand.vmem [shape: bf16[2,32,128], index: 9, kind: input, shape index: {}]
  %s10 = inlined_call_operand.vmem [shape: f32[2,1,128], index: 10, kind: input, shape index: {}]
  %s11 = inlined_call_operand.vmem [shape: bf16[2,128,32], index: 11, kind: input, shape index: {}]
  %s12 = inlined_call_operand.vmem [shape: f32[2,1,32], index: 12, kind: input, shape index: {}]
  %s13 = inlined_call_operand.hbm [shape: f32[2,8,32], index: 13, kind: output, shape index: {}]
  %s14 = sld [smem:[#allocation0]]
  $region93: #{tpu_custom_call.1} parent=0
    _
  %s16 = ssub.s32 1, %s14
  %s17 = scalar_select 0, %s16, %s14
  $region1: #{tpu_custom_call.1} parent=0
    #allocation3 [shape = 'u8[8192]{0}', space=vmem, size = 0x2000, scoped, tag = 'output window, operand 0']
    #allocation4 [shape = 's32[2]{0}', space=sflag, size = 0x8, scoped, tag = 'scoped memory for tpu_custom_call.1']
    %18 = vsyncpa [#allocation4], 0
    %s19 = scalar_lea.sflag [#allocation4], 1
    %20 = vsyncpa %s19, 0
    loop: start=0, step=1, limit=6
    $region2: #{tpu_custom_call.1} parent=1 // loop_pre_header
      _
    $region3: #{tpu_custom_call.1} parent=1 // loop_header
      %s22 = sphi 0, %s26
      %p23 = scmp.ge.s32.totalorder %s22, 6
      %s29 = sphi 0, %s48
      %s30 = sphi 0, %s44
      %s31 = sphi 0, %s40
      %s32 = sphi 0, %s29
      %s33 = sphi 0, %s30
      %s34 = sphi 0, %s31
      %s35 = sphi 0, %s32
      %s36 = sphi 0, %s33
      %s37 = sphi 0, %s34
      %s51 = sphi 0, %s53
      %s54 = sphi 0, %s51
      %s55 = sphi 0, %s54
      %s71 = sphi 0, %s55
      %s77 = sphi 0, %s79
      %s80 = sphi 0, %s77
      %s81 = sphi 0, %s80
      %s97 = sphi 0, %s81
      %s103 = sphi 0, %s105
      %s106 = sphi 0, %s103
      %s107 = sphi 0, %s106
      %s123 = sphi 0, %s107
      %s129 = sphi 0, %s131
      %s132 = sphi 0, %s129
      %s133 = sphi 0, %s132
      %s149 = sphi 0, %s133
      %s155 = sphi 0, %s157
      %s158 = sphi 0, %s155
      %s159 = sphi 0, %s158
      %s175 = sphi 0, %s159
      %s181 = sphi 0, %s183
      %s184 = sphi 0, %s181
      %s185 = sphi 0, %s184
      %s201 = sphi 0, %s185
      %s207 = sphi 0, %s209
      %s210 = sphi 0, %s207
      %s211 = sphi 0, %s210
      %s227 = sphi 0, %s211
      %s233 = sphi 0, %s235
      %s236 = sphi 0, %s233
      %s237 = sphi 0, %s236
      %s253 = sphi 0, %s237
      %s259 = sphi 0, %s261
      %s262 = sphi 0, %s259
      %s263 = sphi 0, %s262
      %s279 = sphi 0, %s263
      %s287 = sphi 0, %s289
      %s290 = sphi 0, %s287
      %s291 = sphi 0, %s290
      %s307 = sphi 0, %s291
      %s315 = sphi 0, %s317
      %s318 = sphi 0, %s315
      %s319 = sphi 0, %s318
      %s335 = sphi 0, %s319
      %s343 = sphi 0, %s345
      %s346 = sphi 0, %s343
      %s347 = sphi 0, %s346
      %s363 = sphi 0, %s347
      %s369 = sphi 0, %s371
      %s372 = sphi 0, %s369
      %s373 = sphi 0, %s372
      %s389 = sphi 0, %s373
      %s395 = sphi 0, %s397
      %s398 = sphi 0, %s395
      %s399 = sphi 0, %s398
      %s415 = sphi 0, %s399
    $region4: #{tpu_custom_call.1} parent=1 // loop_header_branch
      %25 = sbr.rel (%p23) target = $region8
    $region5: #{tpu_custom_call.1} parent=1 // loop_body
      %s27 = ssub.s32 %s22, 1
      %s28 = ssub.s32 %s22, 2
      %s38 = sadd.s32 1, %s31
      %p39 = scmp.ge.s32.totalorder %s38, 1
      %s40 = scalar_select %p39, 0, %s38
      %s41 = sadd.s32 1, %s30
      %s42 = scalar_select %p39, %s41, %s30
      %p43 = scmp.ge.s32.totalorder %s42, 2
      %s44 = scalar_select %p43, 0, %s42
      %s45 = sadd.s32 1, %s29
      %s46 = scalar_select %p43, %s45, %s29
      %p47 = scmp.ge.s32.totalorder %s46, 2
      %s48 = scalar_select %p47, 0, %s46
      %s49 = ssub.s32 %s29, %s48
      %p50 = scmp.eq.s32.totalorder %s49, 0
      %s52 = sadd.s32 %s51, 1
      %s53 = scalar_select %p50, %s51, %s52
      %p56 = pneg %p50
      %p57 = scmp.eq.s32.totalorder %s22, 3
      %p58 = por %p56, %p57
      %p59 = scmp.ne.s32.totalorder %s51, %s54
      %p60 = scmp.eq.s32.totalorder %s22, 0
      %p61 = por %p59, %p60
      %p62 = scmp.ne.s32.totalorder %s51, %s54
      %p63 = scmp.eq.s32.totalorder %s27, 3
      %p64 = por %p62, %p63
      %p65 = scmp.ne.s32.totalorder %s54, %s55
      %p66 = scmp.eq.s32.totalorder %s27, 0
      %p67 = por %p65, %p66
      %p68 = scmp.ne.s32.totalorder %s54, %s55
      %p69 = scmp.eq.s32.totalorder %s28, 3
      %p70 = por %p68, %p69
      %p72 = scmp.ne.s32.totalorder %s55, %s71
      %p73 = scmp.eq.s32.totalorder %s28, 0
      %p74 = por %p72, %p73
      %s75 = ssub.s32 %s30, %s44
      %p76 = scmp.eq.s32.totalorder %s75, 0
      %s78 = sadd.s32 %s77, 1
      %s79 = scalar_select %p76, %s77, %s78
      %p82 = pneg %p76
      %p83 = scmp.eq.s32.totalorder %s22, 3
      %p84 = por %p82, %p83
      %p85 = scmp.ne.s32.totalorder %s77, %s80
      %p86 = scmp.eq.s32.totalorder %s22, 0
      %p87 = por %p85, %p86
      %p88 = scmp.ne.s32.totalorder %s77, %s80
      %p89 = scmp.eq.s32.totalorder %s27, 3
      %p90 = por %p88, %p89
      %p91 = scmp.ne.s32.totalorder %s80, %s81
      %p92 = scmp.eq.s32.totalorder %s27, 0
      %p93 = por %p91, %p92
      %p94 = scmp.ne.s32.totalorder %s80, %s81
      %p95 = scmp.eq.s32.totalorder %s28, 3
      %p96 = por %p94, %p95
      %p98 = scmp.ne.s32.totalorder %s81, %s97
      %p99 = scmp.eq.s32.totalorder %s28, 0
      %p100 = por %p98, %p99
      %s101 = ssub.s32 %s30, %s44
      %p102 = scmp.eq.s32.totalorder %s101, 0
      %s104 = sadd.s32 %s103, 1
      %s105 = scalar_select %p102, %s103, %s104
      %p108 = pneg %p102
      %p109 = scmp.eq.s32.totalorder %s22, 3
      %p110 = por %p108, %p109
      %p111 = scmp.ne.s32.totalorder %s103, %s106
      %p112 = scmp.eq.s32.totalorder %s22, 0
      %p113 = por %p111, %p112
      %p114 = scmp.ne.s32.totalorder %s103, %s106
      %p115 = scmp.eq.s32.totalorder %s27, 3
      %p116 = por %p114, %p115
      %p117 = scmp.ne.s32.totalorder %s106, %s107
      %p118 = scmp.eq.s32.totalorder %s27, 0
      %p119 = por %p117, %p118
      %p120 = scmp.ne.s32.totalorder %s106, %s107
      %p121 = scmp.eq.s32.totalorder %s28, 3
      %p122 = por %p120, %p121
      %p124 = scmp.ne.s32.totalorder %s107, %s123
      %p125 = scmp.eq.s32.totalorder %s28, 0
      %p126 = por %p124, %p125
      %s127 = ssub.s32 %s30, %s44
      %p128 = scmp.eq.s32.totalorder %s127, 0
      %s130 = sadd.s32 %s129, 1
      %s131 = scalar_select %p128, %s129, %s130
      %p134 = pneg %p128
      %p135 = scmp.eq.s32.totalorder %s22, 3
      %p136 = por %p134, %p135
      %p137 = scmp.ne.s32.totalorder %s129, %s132
      %p138 = scmp.eq.s32.totalorder %s22, 0
      %p139 = por %p137, %p138
      %p140 = scmp.ne.s32.totalorder %s129, %s132
      %p141 = scmp.eq.s32.totalorder %s27, 3
      %p142 = por %p140, %p141
      %p143 = scmp.ne.s32.totalorder %s132, %s133
      %p144 = scmp.eq.s32.totalorder %s27, 0
      %p145 = por %p143, %p144
      %p146 = scmp.ne.s32.totalorder %s132, %s133
      %p147 = scmp.eq.s32.totalorder %s28, 3
      %p148 = por %p146, %p147
      %p150 = scmp.ne.s32.totalorder %s133, %s149
      %p151 = scmp.eq.s32.totalorder %s28, 0
      %p152 = por %p150, %p151
      %s153 = ssub.s32 %s30, %s44
      %p154 = scmp.eq.s32.totalorder %s153, 0
      %s156 = sadd.s32 %s155, 1
      %s157 = scalar_select %p154, %s155, %s156
      %p160 = pneg %p154
      %p161 = scmp.eq.s32.totalorder %s22, 3
      %p162 = por %p160, %p161
      %p163 = scmp.ne.s32.totalorder %s155, %s158
      %p164 = scmp.eq.s32.totalorder %s22, 0
      %p165 = por %p163, %p164
      %p166 = scmp.ne.s32.totalorder %s155, %s158
      %p167 = scmp.eq.s32.totalorder %s27, 3
      %p168 = por %p166, %p167
      %p169 = scmp.ne.s32.totalorder %s158, %s159
      %p170 = scmp.eq.s32.totalorder %s27, 0
      %p171 = por %p169, %p170
      %p172 = scmp.ne.s32.totalorder %s158, %s159
      %p173 = scmp.eq.s32.totalorder %s28, 3
      %p174 = por %p172, %p173
      %p176 = scmp.ne.s32.totalorder %s159, %s175
      %p177 = scmp.eq.s32.totalorder %s28, 0
      %p178 = por %p176, %p177
      %s179 = ssub.s32 %s30, %s44
      %p180 = scmp.eq.s32.totalorder %s179, 0
      %s182 = sadd.s32 %s181, 1
      %s183 = scalar_select %p180, %s181, %s182
      %p186 = pneg %p180
      %p187 = scmp.eq.s32.totalorder %s22, 3
      %p188 = por %p186, %p187
      %p189 = scmp.ne.s32.totalorder %s181, %s184
      %p190 = scmp.eq.s32.totalorder %s22, 0
      %p191 = por %p189, %p190
      %p192 = scmp.ne.s32.totalorder %s181, %s184
      %p193 = scmp.eq.s32.totalorder %s27, 3
      %p194 = por %p192, %p193
      %p195 = scmp.ne.s32.totalorder %s184, %s185
      %p196 = scmp.eq.s32.totalorder %s27, 0
      %p197 = por %p195, %p196
      %p198 = scmp.ne.s32.totalorder %s184, %s185
      %p199 = scmp.eq.s32.totalorder %s28, 3
      %p200 = por %p198, %p199
      %p202 = scmp.ne.s32.totalorder %s185, %s201
      %p203 = scmp.eq.s32.totalorder %s28, 0
      %p204 = por %p202, %p203
      %s205 = ssub.s32 %s30, %s44
      %p206 = scmp.eq.s32.totalorder %s205, 0
      %s208 = sadd.s32 %s207, 1
      %s209 = scalar_select %p206, %s207, %s208
      %p212 = pneg %p206
      %p213 = scmp.eq.s32.totalorder %s22, 3
      %p214 = por %p212, %p213
      %p215 = scmp.ne.s32.totalorder %s207, %s210
      %p216 = scmp.eq.s32.totalorder %s22, 0
      %p217 = por %p215, %p216
      %p218 = scmp.ne.s32.totalorder %s207, %s210
      %p219 = scmp.eq.s32.totalorder %s27, 3
      %p220 = por %p218, %p219
      %p221 = scmp.ne.s32.totalorder %s210, %s211
      %p222 = scmp.eq.s32.totalorder %s27, 0
      %p223 = por %p221, %p222
      %p224 = scmp.ne.s32.totalorder %s210, %s211
      %p225 = scmp.eq.s32.totalorder %s28, 3
      %p226 = por %p224, %p225
      %p228 = scmp.ne.s32.totalorder %s211, %s227
      %p229 = scmp.eq.s32.totalorder %s28, 0
      %p230 = por %p228, %p229
      %s231 = ssub.s32 %s30, %s44
      %p232 = scmp.eq.s32.totalorder %s231, 0
      %s234 = sadd.s32 %s233, 1
      %s235 = scalar_select %p232, %s233, %s234
      %p238 = pneg %p232
      %p239 = scmp.eq.s32.totalorder %s22, 3
      %p240 = por %p238, %p239
      %p241 = scmp.ne.s32.totalorder %s233, %s236
      %p242 = scmp.eq.s32.totalorder %s22, 0
      %p243 = por %p241, %p242
      %p244 = scmp.ne.s32.totalorder %s233, %s236
      %p245 = scmp.eq.s32.totalorder %s27, 3
      %p246 = por %p244, %p245
      %p247 = scmp.ne.s32.totalorder %s236, %s237
      %p248 = scmp.eq.s32.totalorder %s27, 0
      %p249 = por %p247, %p248
      %p250 = scmp.ne.s32.totalorder %s236, %s237
      %p251 = scmp.eq.s32.totalorder %s28, 3
      %p252 = por %p250, %p251
      %p254 = scmp.ne.s32.totalorder %s237, %s253
      %p255 = scmp.eq.s32.totalorder %s28, 0
      %p256 = por %p254, %p255
      %s257 = ssub.s32 %s30, %s44
      %p258 = scmp.eq.s32.totalorder %s257, 0
      %s260 = sadd.s32 %s259, 1
      %s261 = scalar_select %p258, %s259, %s260
      %p264 = pneg %p258
      %p265 = scmp.eq.s32.totalorder %s22, 3
      %p266 = por %p264, %p265
      %p267 = scmp.ne.s32.totalorder %s259, %s262
      %p268 = scmp.eq.s32.totalorder %s22, 0
      %p269 = por %p267, %p268
      %p270 = scmp.ne.s32.totalorder %s259, %s262
      %p271 = scmp.eq.s32.totalorder %s27, 3
      %p272 = por %p270, %p271
      %p273 = scmp.ne.s32.totalorder %s262, %s263
      %p274 = scmp.eq.s32.totalorder %s27, 0
      %p275 = por %p273, %p274
      %p276 = scmp.ne.s32.totalorder %s262, %s263
      %p277 = scmp.eq.s32.totalorder %s28, 3
      %p278 = por %p276, %p277
      %p280 = scmp.ne.s32.totalorder %s263, %s279
      %p281 = scmp.eq.s32.totalorder %s28, 0
      %p282 = por %p280, %p281
      %s283 = ssub.s32 %s30, %s44
      %s284 = ssub.s32 %s31, %s40
      %s285 = sor.u32 %s283, %s284
      %p286 = scmp.eq.s32.totalorder %s285, 0
      %s288 = sadd.s32 %s287, 1
      %s289 = scalar_select %p286, %s287, %s288
      %p292 = pneg %p286
      %p293 = scmp.eq.s32.totalorder %s22, 3
      %p294 = por %p292, %p293
      %p295 = scmp.ne.s32.totalorder %s287, %s290
      %p296 = scmp.eq.s32.totalorder %s22, 0
      %p297 = por %p295, %p296
      %p298 = scmp.ne.s32.totalorder %s287, %s290
      %p299 = scmp.eq.s32.totalorder %s27, 3
      %p300 = por %p298, %p299
      %p301 = scmp.ne.s32.totalorder %s290, %s291
      %p302 = scmp.eq.s32.totalorder %s27, 0
      %p303 = por %p301, %p302
      %p304 = scmp.ne.s32.totalorder %s290, %s291
      %p305 = scmp.eq.s32.totalorder %s28, 3
      %p306 = por %p304, %p305
      %p308 = scmp.ne.s32.totalorder %s291, %s307
      %p309 = scmp.eq.s32.totalorder %s28, 0
      %p310 = por %p308, %p309
      %s311 = ssub.s32 %s30, %s44
      %s312 = ssub.s32 %s31, %s40
      %s313 = sor.u32 %s311, %s312
      %p314 = scmp.eq.s32.totalorder %s313, 0
      %s316 = sadd.s32 %s315, 1
      %s317 = scalar_select %p314, %s315, %s316
      %p320 = pneg %p314
      %p321 = scmp.eq.s32.totalorder %s22, 3
      %p322 = por %p320, %p321
      %p323 = scmp.ne.s32.totalorder %s315, %s318
      %p324 = scmp.eq.s32.totalorder %s22, 0
      %p325 = por %p323, %p324
      %p326 = scmp.ne.s32.totalorder %s315, %s318
      %p327 = scmp.eq.s32.totalorder %s27, 3
      %p328 = por %p326, %p327
      %p329 = scmp.ne.s32.totalorder %s318, %s319
      %p330 = scmp.eq.s32.totalorder %s27, 0
      %p331 = por %p329, %p330
      %p332 = scmp.ne.s32.totalorder %s318, %s319
      %p333 = scmp.eq.s32.totalorder %s28, 3
      %p334 = por %p332, %p333
      %p336 = scmp.ne.s32.totalorder %s319, %s335
      %p337 = scmp.eq.s32.totalorder %s28, 0
      %p338 = por %p336, %p337
      %s339 = ssub.s32 %s30, %s44
      %s340 = ssub.s32 %s31, %s40
      %s341 = sor.u32 %s339, %s340
      %p342 = scmp.eq.s32.totalorder %s341, 0
      %s344 = sadd.s32 %s343, 1
      %s345 = scalar_select %p342, %s343, %s344
      %p348 = pneg %p342
      %p349 = scmp.eq.s32.totalorder %s22, 3
      %p350 = por %p348, %p349
      %p351 = scmp.ne.s32.totalorder %s343, %s346
      %p352 = scmp.eq.s32.totalorder %s22, 0
      %p353 = por %p351, %p352
      %p354 = scmp.ne.s32.totalorder %s343, %s346
      %p355 = scmp.eq.s32.totalorder %s27, 3
      %p356 = por %p354, %p355
      %p357 = scmp.ne.s32.totalorder %s346, %s347
      %p358 = scmp.eq.s32.totalorder %s27, 0
      %p359 = por %p357, %p358
      %p360 = scmp.ne.s32.totalorder %s346, %s347
      %p361 = scmp.eq.s32.totalorder %s28, 3
      %p362 = por %p360, %p361
      %p364 = scmp.ne.s32.totalorder %s347, %s363
      %p365 = scmp.eq.s32.totalorder %s28, 0
      %p366 = por %p364, %p365
      %s367 = ssub.s32 %s30, %s44
      %p368 = scmp.eq.s32.totalorder %s367, 0
      %s370 = sadd.s32 %s369, 1
      %s371 = scalar_select %p368, %s369, %s370
      %p374 = pneg %p368
      %p375 = scmp.eq.s32.totalorder %s22, 3
      %p376 = por %p374, %p375
      %p377 = scmp.ne.s32.totalorder %s369, %s372
      %p378 = scmp.eq.s32.totalorder %s22, 0
      %p379 = por %p377, %p378
      %p380 = scmp.ne.s32.totalorder %s369, %s372
      %p381 = scmp.eq.s32.totalorder %s27, 3
      %p382 = por %p380, %p381
      %p383 = scmp.ne.s32.totalorder %s372, %s373
      %p384 = scmp.eq.s32.totalorder %s27, 0
      %p385 = por %p383, %p384
      %p386 = scmp.ne.s32.totalorder %s372, %s373
      %p387 = scmp.eq.s32.totalorder %s28, 3
      %p388 = por %p386, %p387
      %p390 = scmp.ne.s32.totalorder %s373, %s389
      %p391 = scmp.eq.s32.totalorder %s28, 0
      %p392 = por %p390, %p391
      %s393 = ssub.s32 %s29, %s48
      %p394 = scmp.eq.s32.totalorder %s393, 0
      %s396 = sadd.s32 %s395, 1
      %s397 = scalar_select %p394, %s395, %s396
      %p400 = pneg %p394
      %p401 = scmp.eq.s32.totalorder %s22, 3
      %p402 = por %p400, %p401
      %p403 = scmp.ne.s32.totalorder %s395, %s398
      %p404 = scmp.eq.s32.totalorder %s22, 0
      %p405 = por %p403, %p404
      %p406 = scmp.ne.s32.totalorder %s395, %s398
      %p407 = scmp.eq.s32.totalorder %s27, 3
      %p408 = por %p406, %p407
      %p409 = scmp.ne.s32.totalorder %s398, %s399
      %p410 = scmp.eq.s32.totalorder %s27, 0
      %p411 = por %p409, %p410
      %p412 = scmp.ne.s32.totalorder %s398, %s399
      %p413 = scmp.eq.s32.totalorder %s28, 3
      %p414 = por %p412, %p413
      %p416 = scmp.ne.s32.totalorder %s399, %s415
      %p417 = scmp.eq.s32.totalorder %s28, 0
      %p418 = por %p416, %p417
      %p419 = scmp.le.s32.totalorder 1, %s22
      %p420 = scmp.lt.s32.totalorder %s22, 5
      %p421 = pnand %p419, %p420
      %p422 = pneg %p421
      // Predicated region
      $region9: #{tpu_custom_call.1} parent=5 // pred_check
        _
      $region10: #{tpu_custom_call.1} parent=5 // pred_check_branch
        %424 = sbr.rel (%p421) target = $region12
      $region11: #{tpu_custom_call.1} parent=5 // pred_region
        %s425 = ssub.s32 %s22, 1
      $region12: #{tpu_custom_call.1} parent=5 // pred_fallthru
        _
      %p426 = scmp.lt.s32.totalorder %s22, 4
      // Predicated region
      $region13: #{tpu_custom_call.1} parent=5 // pred_check
        %p427 = pneg %p426
      $region14: #{tpu_custom_call.1} parent=5 // pred_check_branch
        %429 = sbr.rel (%p427) target = $region16
      $region15: #{tpu_custom_call.1} parent=5 // pred_region
        // Predicated region
        $region17: #{tpu_custom_call.1} parent=15 // pred_check
          %p430 = pneg %p61
        $region18: #{tpu_custom_call.1} parent=15 // pred_check_branch
          %432 = sbr.rel (%p430) target = $region20
        $region19: #{tpu_custom_call.1} parent=15 // pred_region
          %p433 = scmp.lt.s32.totalorder %s29, 1
          %s434 = scalar_select %p433, %s29, 1
          %s435 = smul.addr %s434, 8
          %s436 = scalar_lea.vmem %s0, %s435
        $region20: #{tpu_custom_call.1} parent=15 // pred_fallthru
          _
        // Predicated region
        $region21: #{tpu_custom_call.1} parent=15 // pred_check
          %p437 = pneg %p87
        $region22: #{tpu_custom_call.1} parent=15 // pred_check_branch
          %439 = sbr.rel (%p437) target = $region24
        $region23: #{tpu_custom_call.1} parent=15 // pred_region
          %p440 = scmp.lt.s32.totalorder %s30, 1
          %s441 = scalar_select %p440, %s30, 1
          %s442 = scalar_lea.vmem %s1, %s441
        $region24: #{tpu_custom_call.1} parent=15 // pred_fallthru
          _
        // Predicated region
        $region25: #{tpu_custom_call.1} parent=15 // pred_check
          %p443 = pneg %p113
        $region26: #{tpu_custom_call.1} parent=15 // pred_check_branch
          %445 = sbr.rel (%p443) target = $region28
        $region27: #{tpu_custom_call.1} parent=15 // pred_region
          %p446 = scmp.lt.s32.totalorder %s30, 1
          %s447 = scalar_select %p446, %s30, 1
          %s448 = scalar_lea.vmem %s2, %s447
        $region28: #{tpu_custom_call.1} parent=15 // pred_fallthru
          _
        // Predicated region
        $region29: #{tpu_custom_call.1} parent=15 // pred_check
          %p449 = pneg %p139
        $region30: #{tpu_custom_call.1} parent=15 // pred_check_branch
          %451 = sbr.rel (%p449) target = $region32
        $region31: #{tpu_custom_call.1} parent=15 // pred_region
          %p452 = scmp.lt.s32.totalorder %s30, 1
          %s453 = scalar_select %p452, %s30, 1
          %s454 = smul.addr %s453, 4
          %s455 = smul.addr %s454, 4
          %s456 = scalar_lea.vmem %s3, %s455
        $region32: #{tpu_custom_call.1} parent=15 // pred_fallthru
          _
        // Predicated region
        $region33: #{tpu_custom_call.1} parent=15 // pred_check
          %p457 = pneg %p165
        $region34: #{tpu_custom_call.1} parent=15 // pred_check_branch
          %459 = sbr.rel (%p457) target = $region36
        $region35: #{tpu_custom_call.1} parent=15 // pred_region
          %p460 = scmp.lt.s32.totalorder %s30, 1
          %s461 = scalar_select %p460, %s30, 1
          %s462 = scalar_lea.vmem %s4, %s461
        $region36: #{tpu_custom_call.1} parent=15 // pred_fallthru
          _
        // Predicated region
        $region37: #{tpu_custom_call.1} parent=15 // pred_check
          %p463 = pneg %p191
        $region38: #{tpu_custom_call.1} parent=15 // pred_check_branch
          %465 = sbr.rel (%p463) target = $region40
        $region39: #{tpu_custom_call.1} parent=15 // pred_region
          %p466 = scmp.lt.s32.totalorder %s30, 1
          %s467 = scalar_select %p466, %s30, 1
          %s468 = smul.addr %s467, 4
          %s469 = smul.addr %s468, 4
          %s470 = scalar_lea.vmem %s5, %s469
        $region40: #{tpu_custom_call.1} parent=15 // pred_fallthru
          _
        // Predicated region
        $region41: #{tpu_custom_call.1} parent=15 // pred_check
          %p471 = pneg %p217
        $region42: #{tpu_custom_call.1} parent=15 // pred_check_branch
          %473 = sbr.rel (%p471) target = $region44
        $region43: #{tpu_custom_call.1} parent=15 // pred_region
          %p474 = scmp.lt.s32.totalorder %s30, 1
          %s475 = scalar_select %p474, %s30, 1
          %s476 = scalar_lea.vmem %s6, %s475
        $region44: #{tpu_custom_call.1} parent=15 // pred_fallthru
          _
        // Predicated region
        $region45: #{tpu_custom_call.1} parent=15 // pred_check
          %p477 = pneg %p243
        $region46: #{tpu_custom_call.1} parent=15 // pred_check_branch
          %479 = sbr.rel (%p477) target = $region48
        $region47: #{tpu_custom_call.1} parent=15 // pred_region
          %p480 = scmp.lt.s32.totalorder %s30, 1
          %s481 = scalar_select %p480, %s30, 1
          %s482 = scalar_lea.vmem %s7, %s481
        $region48: #{tpu_custom_call.1} parent=15 // pred_fallthru
          _
        // Predicated region
        $region49: #{tpu_custom_call.1} parent=15 // pred_check
          %p483 = pneg %p269
        $region50: #{tpu_custom_call.1} parent=15 // pred_check_branch
          %485 = sbr.rel (%p483) target = $region52
        $region51: #{tpu_custom_call.1} parent=15 // pred_region
          %p486 = scmp.lt.s32.totalorder %s30, 1
          %s487 = scalar_select %p486, %s30, 1
          %s488 = scalar_lea.vmem %s8, %s487
        $region52: #{tpu_custom_call.1} parent=15 // pred_fallthru
          _
        // Predicated region
        $region53: #{tpu_custom_call.1} parent=15 // pred_check
          %p489 = pneg %p297
        $region54: #{tpu_custom_call.1} parent=15 // pred_check_branch
          %491 = sbr.rel (%p489) target = $region56
        $region55: #{tpu_custom_call.1} parent=15 // pred_region
          %p492 = scmp.lt.s32.totalorder %s30, 1
          %s493 = scalar_select %p492, %s30, 1
          %p494 = scmp.lt.s32.totalorder %s31, 0
          %s495 = scalar_select %p494, %s31, 0
          %s496 = smul.addr %s493, 4
          %s497 = sadd.s32 %s495, %s496
          %s498 = smul.addr %s497, 4
          %s499 = scalar_lea.vmem %s9, %s498
        $region56: #{tpu_custom_call.1} parent=15 // pred_fallthru
          _
        // Predicated region
        $region57: #{tpu_custom_call.1} parent=15 // pred_check
          %p500 = pneg %p325
        $region58: #{tpu_custom_call.1} parent=15 // pred_check_branch
          %502 = sbr.rel (%p500) target = $region60
        $region59: #{tpu_custom_call.1} parent=15 // pred_region
          %p503 = scmp.lt.s32.totalorder %s30, 1
          %s504 = scalar_select %p503, %s30, 1
          %p505 = scmp.lt.s32.totalorder %s31, 0
          %s506 = scalar_select %p505, %s31, 0
          %s507 = sadd.s32 %s506, %s504
          %s508 = scalar_lea.vmem %s10, %s507
        $region60: #{tpu_custom_call.1} parent=15 // pred_fallthru
          _
        // Predicated region
        $region61: #{tpu_custom_call.1} parent=15 // pred_check
          %p509 = pneg %p353
        $region62: #{tpu_custom_call.1} parent=15 // pred_check_branch
          %511 = sbr.rel (%p509) target = $region64
        $region63: #{tpu_custom_call.1} parent=15 // pred_region
          %s512 = smul.u32 16, %s31
          %p513 = scmp.lt.s32.totalorder %s30, 1
          %s514 = scalar_select %p513, %s30, 1
          %p515 = scmp.lt.s32.totalorder %s512, 15
          %s516 = scalar_select %p515, %s512, 15
          %s517 = smul.addr %s514, 16
          %s518 = sadd.s32 %s516, %s517
          %s519 = smul.addr %s518, 4
          %s520 = scalar_lea.vmem %s11, %s519
          %s521 = smul.u32 16, %s31
        $region64: #{tpu_custom_call.1} parent=15 // pred_fallthru
          _
        // Predicated region
        $region65: #{tpu_custom_call.1} parent=15 // pred_check
          %p522 = pneg %p379
        $region66: #{tpu_custom_call.1} parent=15 // pred_check_branch
          %524 = sbr.rel (%p522) target = $region68
        $region67: #{tpu_custom_call.1} parent=15 // pred_region
          %p525 = scmp.lt.s32.totalorder %s30, 1
          %s526 = scalar_select %p525, %s30, 1
          %s527 = scalar_lea.vmem %s12, %s526
        $region68: #{tpu_custom_call.1} parent=15 // pred_fallthru
          _
      $region16: #{tpu_custom_call.1} parent=5 // pred_fallthru
        _
      %p528 = scmp.le.s32.totalorder 1, %s22
      %p529 = scmp.lt.s32.totalorder %s22, 5
      %p530 = pnand %p528, %p529
      %p531 = pneg %p530
      // Predicated region
      $region69: #{tpu_custom_call.1} parent=5 // pred_check
        _
      $region70: #{tpu_custom_call.1} parent=5 // pred_check_branch
        %533 = sbr.rel (%p530) target = $region72
      $region71: #{tpu_custom_call.1} parent=5 // pred_region
        %s534 = ssub.s32 %s22, 1
        %p535 = scmp.lt.s32.totalorder %s32, 1
        %s536 = scalar_select %p535, %s32, 1
        %s537 = smul.addr %s536, 8
        %s538 = scalar_lea.vmem %s0, %s537
        %p539 = pneg %p67
        %p540 = pneg %p64
        %p541 = scmp.lt.s32.totalorder %s33, 1
        %s542 = scalar_select %p541, %s33, 1
        %s543 = scalar_lea.vmem %s1, %s542
        %p544 = pneg %p93
        %p545 = pneg %p90
        %p546 = scmp.lt.s32.totalorder %s33, 1
        %s547 = scalar_select %p546, %s33, 1
        %s548 = scalar_lea.vmem %s2, %s547
        %p549 = pneg %p119
        %p550 = pneg %p116
        %p551 = scmp.lt.s32.totalorder %s33, 1
        %s552 = scalar_select %p551, %s33, 1
        %s553 = smul.addr %s552, 4
        %s554 = smul.addr %s553, 4
        %s555 = scalar_lea.vmem %s3, %s554
        %p556 = pneg %p145
        %p557 = pneg %p142
        %p558 = scmp.lt.s32.totalorder %s33, 1
        %s559 = scalar_select %p558, %s33, 1
        %s560 = scalar_lea.vmem %s4, %s559
        %p561 = pneg %p171
        %p562 = pneg %p168
        %p563 = scmp.lt.s32.totalorder %s33, 1
        %s564 = scalar_select %p563, %s33, 1
        %s565 = smul.addr %s564, 4
        %s566 = smul.addr %s565, 4
        %s567 = scalar_lea.vmem %s5, %s566
        %p568 = pneg %p197
        %p569 = pneg %p194
        %p570 = scmp.lt.s32.totalorder %s33, 1
        %s571 = scalar_select %p570, %s33, 1
        %s572 = scalar_lea.vmem %s6, %s571
        %p573 = pneg %p223
        %p574 = pneg %p220
        %p575 = scmp.lt.s32.totalorder %s33, 1
        %s576 = scalar_select %p575, %s33, 1
        %s577 = scalar_lea.vmem %s7, %s576
        %p578 = pneg %p249
        %p579 = pneg %p246
        %p580 = scmp.lt.s32.totalorder %s33, 1
        %s581 = scalar_select %p580, %s33, 1
        %s582 = scalar_lea.vmem %s8, %s581
        %p583 = pneg %p275
        %p584 = pneg %p272
        %p585 = scmp.lt.s32.totalorder %s33, 1
        %s586 = scalar_select %p585, %s33, 1
        %p587 = scmp.lt.s32.totalorder %s34, 0
        %s588 = scalar_select %p587, %s34, 0
        %s589 = smul.addr %s586, 4
        %s590 = sadd.s32 %s588, %s589
        %s591 = smul.addr %s590, 4
        %s592 = scalar_lea.vmem %s9, %s591
        %p593 = pneg %p303
        %p594 = pneg %p300
        %p595 = scmp.lt.s32.totalorder %s33, 1
        %s596 = scalar_select %p595, %s33, 1
        %p597 = scmp.lt.s32.totalorder %s34, 0
        %s598 = scalar_select %p597, %s34, 0
        %s599 = sadd.s32 %s598, %s596
        %s600 = scalar_lea.vmem %s10, %s599
        %p601 = pneg %p331
        %p602 = pneg %p328
        %s603 = smul.u32 16, %s34
        %p604 = scmp.lt.s32.totalorder %s33, 1
        %s605 = scalar_select %p604, %s33, 1
        %p606 = scmp.lt.s32.totalorder %s603, 15
        %s607 = scalar_select %p606, %s603, 15
        %s608 = smul.addr %s605, 16
        %s609 = sadd.s32 %s607, %s608
        %s610 = smul.addr %s609, 4
        %s611 = scalar_lea.vmem %s11, %s610
        %p612 = pneg %p359
        %p613 = pneg %p356
        %p614 = scmp.lt.s32.totalorder %s33, 1
        %s615 = scalar_select %p614, %s33, 1
        %s616 = scalar_lea.vmem %s12, %s615
        %p617 = pneg %p385
        %p618 = pneg %p382
        %p619 = pneg %p411
        %p620 = pneg %p408
        %s621 = sand.u32 %s398, 1
        %s622 = scalar_lea.sflag [#allocation4], %s621
        %s623 = sand.u32 %s398, 1
        %s624 = smul.addr %s623, 8
        %s625 = scalar_lea.vmem [#allocation3], %s624
        %p626 = scmp.lt.s32.totalorder %s32, 1
        %s627 = scalar_select %p626, %s32, 1
        %s628 = smul.addr %s627, 8
        %s629 = scalar_lea.vmem %s0, %s628
        %p630 = scmp.lt.s32.totalorder %s33, 1
        %s631 = scalar_select %p630, %s33, 1
        %s632 = scalar_lea.vmem %s1, %s631
        %p633 = scmp.lt.s32.totalorder %s33, 1
        %s634 = scalar_select %p633, %s33, 1
        %s635 = scalar_lea.vmem %s2, %s634
        %p636 = scmp.lt.s32.totalorder %s33, 1
        %s637 = scalar_select %p636, %s33, 1
        %s638 = smul.addr %s637, 4
        %s639 = smul.addr %s638, 4
        %s640 = scalar_lea.vmem %s3, %s639
        %p641 = scmp.lt.s32.totalorder %s33, 1
        %s642 = scalar_select %p641, %s33, 1
        %s643 = scalar_lea.vmem %s4, %s642
        %p644 = scmp.lt.s32.totalorder %s33, 1
        %s645 = scalar_select %p644, %s33, 1
        %s646 = smul.addr %s645, 4
        %s647 = smul.addr %s646, 4
        %s648 = scalar_lea.vmem %s5, %s647
        %p649 = scmp.lt.s32.totalorder %s33, 1
        %s650 = scalar_select %p649, %s33, 1
        %s651 = scalar_lea.vmem %s6, %s650
        %p652 = scmp.lt.s32.totalorder %s33, 1
        %s653 = scalar_select %p652, %s33, 1
        %s654 = scalar_lea.vmem %s7, %s653
        %p655 = scmp.lt.s32.totalorder %s33, 1
        %s656 = scalar_select %p655, %s33, 1
        %s657 = scalar_lea.vmem %s8, %s656
        %p658 = scmp.lt.s32.totalorder %s33, 1
        %s659 = scalar_select %p658, %s33, 1
        %p660 = scmp.lt.s32.totalorder %s34, 0
        %s661 = scalar_select %p660, %s34, 0
        %s662 = smul.addr %s659, 4
        %s663 = sadd.s32 %s661, %s662
        %s664 = smul.addr %s663, 4
        %s665 = scalar_lea.vmem %s9, %s664
        %p666 = scmp.lt.s32.totalorder %s33, 1
        %s667 = scalar_select %p666, %s33, 1
        %p668 = scmp.lt.s32.totalorder %s34, 0
        %s669 = scalar_select %p668, %s34, 0
        %s670 = sadd.s32 %s669, %s667
        %s671 = scalar_lea.vmem %s10, %s670
        %s672 = smul.u32 16, %s34
        %p673 = scmp.lt.s32.totalorder %s33, 1
        %s674 = scalar_select %p673, %s33, 1
        %p675 = scmp.lt.s32.totalorder %s672, 15
        %s676 = scalar_select %p675, %s672, 15
        %s677 = smul.addr %s674, 16
        %s678 = sadd.s32 %s676, %s677
        %s679 = smul.addr %s678, 4
        %s680 = scalar_lea.vmem %s11, %s679
        %s681 = smul.u32 16, %s34
        %p682 = scmp.lt.s32.totalorder %s33, 1
        %s683 = scalar_select %p682, %s33, 1
        %s684 = scalar_lea.vmem %s12, %s683
        %p686 = scmp.eq.s32.totalorder %s33, 0
        %p687 = scmp.eq.s32.totalorder %s34, 0
        %p688 = pnand %p686, %p687
        %p689 = pneg %p688
        // Predicated region
        $region73: #{tpu_custom_call.1} parent=71 // pred_check
          _
        $region74: #{tpu_custom_call.1} parent=71 // pred_check_branch
          %691 = sbr.rel (%p688) target = $region76
        $region75: #{tpu_custom_call.1} parent=71 // pred_region
          %v692 = vld [vmem:[%s629] sm:$0xff]
          %vm693 = vcmask 261120
          %694 = vst.msk [vmem:[%s625] sm:$0xff] %vm693, %v692
        $region76: #{tpu_custom_call.1} parent=71 // pred_fallthru
          _
        // Predicated region
        $region77: #{tpu_custom_call.1} parent=71 // pred_check
          %p695 = pneg %p687
        $region78: #{tpu_custom_call.1} parent=71 // pred_check_branch
          %697 = sbr.rel (%p695) target = $region80
        $region79: #{tpu_custom_call.1} parent=71 // pred_region
          %v698 = vld [vmem:[%s625] sm:$0xff]
          %v699 = vld [vmem:[%s632] sm:$0x1]
          %v700 = vld [vmem:[%s635] sm:$0x1]
          %vm701 = vcmask 261120
          %v702 = vsel %vm701, %v698, 0.0
          %703 = vadd.xlane.f32.xlu0 %v702
          %v704 = vpop.xlane.xlu0 %703
          %v705 = vrcp.pop 32.0
          %v706 = vmul.f32 32.0, %v705
          %v707 = vsub.f32 1.0, %v706
          %v708 = vmul.f32 %v705, %v707
          %v709 = vadd.f32 %v705, %v708
          %vm710 = vweird.f32 %v705
          %v711 = vsel %vm710, %v705, %v709
          %v712 = vmul.f32 %v704, %v711
          %v713 = vsub.f32 %v698, %v712
          %v714 = vmul.f32 %v713, %v713
          %v715 = vsel %vm701, %v714, 0.0
          %716 = vadd.xlane.f32.xlu0 %v715
          %v717 = vpop.xlane.xlu0 %716
          %v718 = vmul.f32 %v717, %v711
          %v719 = vadd.f32 %v718, 1e-05
          %v720 = vrsqrt.pop %v719
          %v721 = vmul.f32 %v720, %v719
          %v722 = vmul.f32 %v721, %v720
          %v723 = vmul.f32 0.5, %v722
          %v724 = vsub.f32 1.5, %v723
          %v725 = vmul.f32 %v720, %v724
          %vm726 = vweird.f32 %v719
          %vm727 = vweird.f32 %v720
          %vm728 = vmor %vm726, %vm727
          %v729 = vsel %vm728, %v720, %v725
          %v730 = vmul.f32 %v713, %v729
          %v732 = vperm.slane %v699, 0
          %v734 = vmul.f32 %v730, %v732
          %v736 = vperm.slane %v700, 0
          %v738 = vadd.f32 %v734, %v736
          %v739 = vpack.c.bf16 %v738, %v738
          %v740 = vld [vmem:[%s640] sm:$0xf]
          %v741 = vld [vmem:[%s640 + $0x4] sm:$0xf]
          %v742 = vld [vmem:[%s640 + $0x8] sm:$0xf]
          %v743 = vld [vmem:[%s640 + $0xc] sm:$0xf]
          %v744 = vld [vmem:[%s643] sm:$0x1]
          %v746 = vperm.slane %v744, 0
          %v752 = vunpack.c.l.b16 %v740
          %v753 = vunpack.c.l.b16 %v741
          %v754 = vunpack.c.l.b16 %v742
          %v755 = vunpack.c.l.b16 %v743
          %v756 = vpack.c.b16 %v753, %v752
          %v757 = vpack.c.b16 %v755, %v754
          %v761 = vsel %vm701, %v739, 0
          %763 = vmatpush.bf16.msra.mxu0 0
          %764 = vmatpush.bf16.msra.mxu0 0
          %765 = vmatpush.bf16.msra.mxu0 0
          %766 = vmatpush.bf16.msra.mxu0 0
          %767 = vmatpush.bf16.msra.mxu0 0
          %768 = vmatpush.bf16.msra.mxu0 0
          %769 = vmatpush.bf16.msra.mxu0 %v757
          %770 = vmatpush.bf16.msra.mxu0 %v756
          %771 = vmatmul.bf16.gmra.mxu0 %v761
          %v772 = vpop.f32.mrf.mxu0
          %v773 = vadd.f32 %v746, %v772
          %v774 = vpop.f32.mrf.mxu0
          %775 = vdwg.mxu0
          %v776 = vpack.c.bf16 %v773, %v773
          %v777 = vld [vmem:[%s648] sm:$0xf]
          %v778 = vld [vmem:[%s648 + $0x4] sm:$0xf]
          %v779 = vld [vmem:[%s648 + $0x8] sm:$0xf]
          %v780 = vld [vmem:[%s648 + $0xc] sm:$0xf]
          %v782 = vunpack.c.l.b16 %v776
          %v783 = vpack.c.b16 %v782, %v782
          %784 = vrot.lane.b32.xlu0 %v783, 96
          %v785 = vpop.permute.xlu0 %784
          %vm786 = vcmask 64512
          %v788 = vsel %vm786, %v776, 0
          %v791 = vsel %vm786, %v785, 0
          %793 = vmatpush.bf16.xpose.msra.mxu0 0
          %794 = vmatpush.bf16.xpose.msra.mxu0 0
          %795 = vmatpush.bf16.xpose.msra.mxu0 0
          %796 = vmatpush.bf16.xpose.msra.mxu0 0
          %797 = vmatpush.bf16.xpose.msra.mxu0 0
          %798 = vmatpush.bf16.xpose.msra.mxu0 0
          %799 = vmatpush.bf16.xpose.msra.mxu0 0
          %800 = vmatpush.bf16.xpose.msra.mxu0 %v791
          %801 = vmatmul.bf16.gmra.mxu0 %v788
          %v802 = vpop.f32.mrf.mxu0
          %v803 = vadd.f32 0.0, %v802
          %v804 = vpop.f32.mrf.mxu0
          %805 = vdwg.mxu0
          %v806 = vsel %vm786, %v803, -inf
          %807 = vmax.xlane.f32.xlu0 %v806
          %v808 = vpop.xlane.xlu0 %807
          %v809 = vsub.f32 %v803, %v808
          %v810 = vmul.f32 %v809, 1.442695
          %v811 = vpow.pop %v810
          %v812 = vsel %vm786, %v811, 0.0
          %813 = vadd.xlane.f32.xlu0 %v812
          %v814 = vpop.xlane.xlu0 %813
          %v815 = vrcp.pop %v814
          %v816 = vmul.f32 %v811, %v815
          %v817 = vpack.c.bf16 %v816, %v816
          %818 = vrot.lane.b32.xlu0 %v783, 64
          %v819 = vpop.permute.xlu0 %818
          %v821 = vsel %vm786, %v817, 0
          %vm823 = vcmask 1043456
          %v825 = vsel %vm823, %v819, 0
          %827 = vmatpush.bf16.msra.mxu0 0
          %828 = vmatpush.bf16.msra.mxu0 0
          %829 = vmatpush.bf16.msra.mxu0 0
          %830 = vmatpush.bf16.msra.mxu0 0
          %831 = vmatpush.bf16.msra.mxu0 0
          %832 = vmatpush.bf16.msra.mxu0 0
          %833 = vmatpush.bf16.msra.mxu0 0
          %834 = vmatpush.bf16.msra.mxu0 %v825
          %835 = vmatmul.bf16.gmra.mxu0 %v821
          %v836 = vpop.f32.mrf.mxu0
          %v837 = vadd.f32 0.0, %v836
          %v838 = vpop.f32.mrf.mxu0
          %839 = vdwg.mxu0
          %v840 = vpack.c.bf16 %v837, %v837
          %841 = vrot.lane.b32.xlu0 %v783, 120
          %v842 = vpop.permute.xlu0 %841
          %843 = vrot.lane.b32.xlu0 %v783, 88
          %v844 = vpop.permute.xlu0 %843
          %v846 = vsel %vm786, %v842, 0
          %v849 = vsel %vm786, %v844, 0
          %851 = vmatpush.bf16.xpose.msra.mxu0 0
          %852 = vmatpush.bf16.xpose.msra.mxu0 0
          %853 = vmatpush.bf16.xpose.msra.mxu0 0
          %854 = vmatpush.bf16.xpose.msra.mxu0 0
          %855 = vmatpush.bf16.xpose.msra.mxu0 0
          %856 = vmatpush.bf16.xpose.msra.mxu0 0
          %857 = vmatpush.bf16.xpose.msra.mxu0 0
          %858 = vmatpush.bf16.xpose.msra.mxu0 %v849
          %859 = vmatmul.bf16.gmra.mxu0 %v846
          %v860 = vpop.f32.mrf.mxu0
          %v861 = vadd.f32 0.0, %v860
          %v862 = vpop.f32.mrf.mxu0
          %863 = vdwg.mxu0
          %v864 = vsel %vm786, %v861, -inf
          %865 = vmax.xlane.f32.xlu0 %v864
          %v866 = vpop.xlane.xlu0 %865
          %v867 = vsub.f32 %v861, %v866
          %v868 = vmul.f32 %v867, 1.442695
          %v869 = vpow.pop %v868
          %v870 = vsel %vm786, %v869, 0.0
          %871 = vadd.xlane.f32.xlu0 %v870
          %v872 = vpop.xlane.xlu0 %871
          %v873 = vrcp.pop %v872
          %v874 = vmul.f32 %v869, %v873
          %v875 = vpack.c.bf16 %v874, %v874
          %876 = vrot.lane.b32.xlu0 %v783, 56
          %v877 = vpop.permute.xlu0 %876
          %v879 = vsel %vm786, %v875, 0
          %v882 = vsel %vm823, %v877, 0
          %884 = vmatpush.bf16.msra.mxu0 0
          %885 = vmatpush.bf16.msra.mxu0 0
          %886 = vmatpush.bf16.msra.mxu0 0
          %887 = vmatpush.bf16.msra.mxu0 0
          %888 = vmatpush.bf16.msra.mxu0 0
          %889 = vmatpush.bf16.msra.mxu0 0
          %890 = vmatpush.bf16.msra.mxu0 0
          %891 = vmatpush.bf16.msra.mxu0 %v882
          %892 = vmatmul.bf16.gmra.mxu0 %v879
          %v893 = vpop.f32.mrf.mxu0
          %v894 = vadd.f32 0.0, %v893
          %v895 = vpop.f32.mrf.mxu0
          %896 = vdwg.mxu0
          %v897 = vpack.c.bf16 %v894, %v894
          %v899 = vsel %vm786, %v897, 0
          %v902 = vsel %vm823, %v778, 0
          %904 = vmatpush.bf16.msra.mxu0 0
          %905 = vmatpush.bf16.msra.mxu0 0
          %906 = vmatpush.bf16.msra.mxu0 0
          %907 = vmatpush.bf16.msra.mxu0 0
          %908 = vmatpush.bf16.msra.mxu0 0
          %909 = vmatpush.bf16.msra.mxu0 0
          %910 = vmatpush.bf16.msra.mxu0 0
          %911 = vmatpush.bf16.msra.mxu0 %v902
          %912 = vmatmul.bf16.gmra.mxu0 %v899
          %v913 = vpop.f32.mrf.mxu0
          %v914 = vadd.f32 0.0, %v913
          %v915 = vpop.f32.mrf.mxu0
          %916 = vdwg.mxu0
          %v918 = vsel %vm786, %v840, 0
          %v921 = vsel %vm823, %v777, 0
          %923 = vmatpush.bf16.msra.mxu0 0
          %924 = vmatpush.bf16.msra.mxu0 0
          %925 = vmatpush.bf16.msra.mxu0 0
          %926 = vmatpush.bf16.msra.mxu0 0
          %927 = vmatpush.bf16.msra.mxu0 0
          %928 = vmatpush.bf16.msra.mxu0 0
          %929 = vmatpush.bf16.msra.mxu0 0
          %930 = vmatpush.bf16.msra.mxu0 %v921
          %931 = vmatmul.bf16.gmra.mxu0 %v918
          %v932 = vpop.f32.mrf.mxu0
          %v933 = vadd.f32 %v914, %v932
          %v934 = vpop.f32.mrf.mxu0
          %935 = vdwg.mxu0
          %936 = vrot.lane.b32.xlu0 %v783, 112
          %v937 = vpop.permute.xlu0 %936
          %938 = vrot.lane.b32.xlu0 %v783, 80
          %v939 = vpop.permute.xlu0 %938
          %v941 = vsel %vm786, %v937, 0
          %v944 = vsel %vm786, %v939, 0
          %946 = vmatpush.bf16.xpose.msra.mxu0 0
          %947 = vmatpush.bf16.xpose.msra.mxu0 0
          %948 = vmatpush.bf16.xpose.msra.mxu0 0
          %949 = vmatpush.bf16.xpose.msra.mxu0 0
          %950 = vmatpush.bf16.xpose.msra.mxu0 0
          %951 = vmatpush.bf16.xpose.msra.mxu0 0
          %952 = vmatpush.bf16.xpose.msra.mxu0 0
          %953 = vmatpush.bf16.xpose.msra.mxu0 %v944
          %954 = vmatmul.bf16.gmra.mxu0 %v941
          %v955 = vpop.f32.mrf.mxu0
          %v956 = vadd.f32 0.0, %v955
          %v957 = vpop.f32.mrf.mxu0
          %958 = vdwg.mxu0
          %v959 = vsel %vm786, %v956, -inf
          %960 = vmax.xlane.f32.xlu0 %v959
          %v961 = vpop.xlane.xlu0 %960
          %v962 = vsub.f32 %v956, %v961
          %v963 = vmul.f32 %v962, 1.442695
          %v964 = vpow.pop %v963
          %v965 = vsel %vm786, %v964, 0.0
          %966 = vadd.xlane.f32.xlu0 %v965
          %v967 = vpop.xlane.xlu0 %966
          %v968 = vrcp.pop %v967
          %v969 = vmul.f32 %v964, %v968
          %v970 = vpack.c.bf16 %v969, %v969
          %971 = vrot.lane.b32.xlu0 %v783, 48
          %v972 = vpop.permute.xlu0 %971
          %v974 = vsel %vm786, %v970, 0
          %v977 = vsel %vm823, %v972, 0
          %979 = vmatpush.bf16.msra.mxu0 0
          %980 = vmatpush.bf16.msra.mxu0 0
          %981 = vmatpush.bf16.msra.mxu0 0
          %982 = vmatpush.bf16.msra.mxu0 0
          %983 = vmatpush.bf16.msra.mxu0 0
          %984 = vmatpush.bf16.msra.mxu0 0
          %985 = vmatpush.bf16.msra.mxu0 0
          %986 = vmatpush.bf16.msra.mxu0 %v977
          %987 = vmatmul.bf16.gmra.mxu0 %v974
          %v988 = vpop.f32.mrf.mxu0
          %v989 = vadd.f32 0.0, %v988
          %v990 = vpop.f32.mrf.mxu0
          %991 = vdwg.mxu0
          %v992 = vpack.c.bf16 %v989, %v989
          %v994 = vsel %vm786, %v992, 0
          %v997 = vsel %vm823, %v779, 0
          %999 = vmatpush.bf16.msra.mxu0 0
          %1000 = vmatpush.bf16.msra.mxu0 0
          %1001 = vmatpush.bf16.msra.mxu0 0
          %1002 = vmatpush.bf16.msra.mxu0 0
          %1003 = vmatpush.bf16.msra.mxu0 0
          %1004 = vmatpush.bf16.msra.mxu0 0
          %1005 = vmatpush.bf16.msra.mxu0 0
          %1006 = vmatpush.bf16.msra.mxu0 %v997
          %1007 = vmatmul.bf16.gmra.mxu0 %v994
          %v1008 = vpop.f32.mrf.mxu0
          %v1009 = vadd.f32 0.0, %v1008
          %v1010 = vpop.f32.mrf.mxu0
          %1011 = vdwg.mxu0
          %v1012 = vadd.f32 %v933, %v1009
          %1013 = vrot.lane.b32.xlu0 %v783, 104
          %v1014 = vpop.permute.xlu0 %1013
          %1015 = vrot.lane.b32.xlu0 %v783, 72
          %v1016 = vpop.permute.xlu0 %1015
          %v1018 = vsel %vm786, %v1014, 0
          %v1021 = vsel %vm786, %v1016, 0
          %1023 = vmatpush.bf16.xpose.msra.mxu0 0
          %1024 = vmatpush.bf16.xpose.msra.mxu0 0
          %1025 = vmatpush.bf16.xpose.msra.mxu0 0
          %1026 = vmatpush.bf16.xpose.msra.mxu0 0
          %1027 = vmatpush.bf16.xpose.msra.mxu0 0
          %1028 = vmatpush.bf16.xpose.msra.mxu0 0
          %1029 = vmatpush.bf16.xpose.msra.mxu0 0
          %1030 = vmatpush.bf16.xpose.msra.mxu0 %v1021
          %1031 = vmatmul.bf16.gmra.mxu0 %v1018
          %v1032 = vpop.f32.mrf.mxu0
          %v1033 = vadd.f32 0.0, %v1032
          %v1034 = vpop.f32.mrf.mxu0
          %1035 = vdwg.mxu0
          %v1036 = vsel %vm786, %v1033, -inf
          %1037 = vmax.xlane.f32.xlu0 %v1036
          %v1038 = vpop.xlane.xlu0 %1037
          %v1039 = vsub.f32 %v1033, %v1038
          %v1040 = vmul.f32 %v1039, 1.442695
          %v1041 = vpow.pop %v1040
          %v1042 = vsel %vm786, %v1041, 0.0
          %1043 = vadd.xlane.f32.xlu0 %v1042
          %v1044 = vpop.xlane.xlu0 %1043
          %v1045 = vrcp.pop %v1044
          %v1046 = vmul.f32 %v1041, %v1045
          %v1047 = vpack.c.bf16 %v1046, %v1046
          %1048 = vrot.lane.b32.xlu0 %v783, 40
          %v1049 = vpop.permute.xlu0 %1048
          %v1051 = vsel %vm786, %v1047, 0
          %v1054 = vsel %vm823, %v1049, 0
          %1056 = vmatpush.bf16.msra.mxu0 0
          %1057 = vmatpush.bf16.msra.mxu0 0
          %1058 = vmatpush.bf16.msra.mxu0 0
          %1059 = vmatpush.bf16.msra.mxu0 0
          %1060 = vmatpush.bf16.msra.mxu0 0
          %1061 = vmatpush.bf16.msra.mxu0 0
          %1062 = vmatpush.bf16.msra.mxu0 0
          %1063 = vmatpush.bf16.msra.mxu0 %v1054
          %1064 = vmatmul.bf16.gmra.mxu0 %v1051
          %v1065 = vpop.f32.mrf.mxu0
          %v1066 = vadd.f32 0.0, %v1065
          %v1067 = vpop.f32.mrf.mxu0
          %1068 = vdwg.mxu0
          %v1069 = vpack.c.bf16 %v1066, %v1066
          %v1071 = vsel %vm786, %v1069, 0
          %v1074 = vsel %vm823, %v780, 0
          %1076 = vmatpush.bf16.msra.mxu0 0
          %1077 = vmatpush.bf16.msra.mxu0 0
          %1078 = vmatpush.bf16.msra.mxu0 0
          %1079 = vmatpush.bf16.msra.mxu0 0
          %1080 = vmatpush.bf16.msra.mxu0 0
          %1081 = vmatpush.bf16.msra.mxu0 0
          %1082 = vmatpush.bf16.msra.mxu0 0
          %1083 = vmatpush.bf16.msra.mxu0 %v1074
          %1084 = vmatmul.bf16.gmra.mxu0 %v1071
          %v1085 = vpop.f32.mrf.mxu0
          %v1086 = vadd.f32 0.0, %v1085
          %v1087 = vpop.f32.mrf.mxu0
          %1088 = vdwg.mxu0
          %v1089 = vadd.f32 %v1012, %v1086
          %v1090 = vadd.f32 %v698, %v1089
          %v1091 = vld [vmem:[%s651] sm:$0x1]
          %v1093 = vperm.slane %v1091, 0
          %v1095 = vadd.f32 %v1090, %v1093
          %v1096 = vld [vmem:[%s654] sm:$0x1]
          %v1097 = vld [vmem:[%s657] sm:$0x1]
          %v1098 = vsel %vm701, %v1095, 0.0
          %1099 = vadd.xlane.f32.xlu0 %v1098
          %v1100 = vpop.xlane.xlu0 %1099
          %v1101 = vmul.f32 %v1100, %v711
          %v1102 = vsub.f32 %v1095, %v1101
          %v1103 = vmul.f32 %v1102, %v1102
          %v1104 = vsel %vm701, %v1103, 0.0
          %1105 = vadd.xlane.f32.xlu0 %v1104
          %v1106 = vpop.xlane.xlu0 %1105
          %v1107 = vmul.f32 %v1106, %v711
          %v1108 = vadd.f32 %v1107, 1e-05
          %v1109 = vrsqrt.pop %v1108
          %v1110 = vmul.f32 %v1109, %v1108
          %v1111 = vmul.f32 %v1110, %v1109
          %v1112 = vmul.f32 0.5, %v1111
          %v1113 = vsub.f32 1.5, %v1112
          %v1114 = vmul.f32 %v1109, %v1113
          %vm1115 = vweird.f32 %v1108
          %vm1116 = vweird.f32 %v1109
          %vm1117 = vmor %vm1115, %vm1116
          %v1118 = vsel %vm1117, %v1109, %v1114
          %v1119 = vmul.f32 %v1102, %v1118
          %v1121 = vperm.slane %v1096, 0
          %v1123 = vmul.f32 %v1119, %v1121
          %v1125 = vperm.slane %v1097, 0
          %v1127 = vadd.f32 %v1123, %v1125
          %v1128 = vpack.c.bf16 %v1127, %v1127
          %vm1129 = vcmask 257024
          %1130 = vst.msk [vmem:[#allocation2] sm:$0xf] %vm1129, %v1128
          %v1131 = vld [vmem:[%s684] sm:$0x1]
          %v1133 = vperm.slane %v1131, 0
          %v1135 = vadd.f32 %v1095, %v1133
          %1136 = vst.msk [vmem:[%s625] sm:$0xff] %vm701, %v1135
        $region80: #{tpu_custom_call.1} parent=71 // pred_fallthru
          _
        %v1137 = vld [vmem:[#allocation2] sm:$0xf]
        %v1138 = vld [vmem:[%s665] sm:$0xf]
        %v1139 = vld [vmem:[%s665 + $0x4] sm:$0xf]
        %v1140 = vld [vmem:[%s665 + $0x8] sm:$0xf]
        %v1141 = vld [vmem:[%s665 + $0xc] sm:$0xf]
        %v1142 = vld [vmem:[%s671] sm:$0x1]
        %v1144 = vperm.slane %v1142, 0
        %v1150 = vunpack.c.l.b16 %v1138
        %v1151 = vunpack.c.l.b16 %v1139
        %v1152 = vunpack.c.l.b16 %v1140
        %v1153 = vunpack.c.l.b16 %v1141
        %v1154 = vpack.c.b16 %v1151, %v1150
        %v1155 = vpack.c.b16 %v1153, %v1152
        %vm1158 = vcmask 261120
        %v1160 = vsel %vm1158, %v1137, 0
        %1162 = vmatpush.bf16.msra.mxu0 0
        %1163 = vmatpush.bf16.msra.mxu0 0
        %1164 = vmatpush.bf16.msra.mxu0 0
        %1165 = vmatpush.bf16.msra.mxu0 0
        %1166 = vmatpush.bf16.msra.mxu0 0
        %1167 = vmatpush.bf16.msra.mxu0 0
        %1168 = vmatpush.bf16.msra.mxu0 %v1155
        %1169 = vmatpush.bf16.msra.mxu0 %v1154
        %1170 = vmatmul.bf16.gmra.mxu0 %v1160
        %v1171 = vpop.f32.mrf.mxu0
        %v1172 = vadd.f32 %v1144, %v1171
        %v1173 = vpop.f32.mrf.mxu0
        %1174 = vdwg.mxu0
        %v1175 = vmul.f32 %v1172, 1.702
        %v1176 = vxor.u32 %v1175, 2147483648
        %v1177 = vmul.f32 %v1176, 1.442695
        %v1178 = vpow.pop %v1177
        %v1179 = vadd.f32 %v1178, 1.0
        %v1180 = vrcp.pop %v1179
        %v1181 = vmul.f32 %v1179, %v1180
        %v1182 = vsub.f32 1.0, %v1181
        %v1183 = vmul.f32 %v1180, %v1182
        %v1184 = vadd.f32 %v1180, %v1183
        %vm1185 = vweird.f32 %v1179
        %vm1186 = vweird.f32 %v1180
        %vm1187 = vmor %vm1185, %vm1186
        %v1188 = vsel %vm1187, %v1180, %v1184
        %v1189 = vand.u32 2147483647, %v1179
        %vm1190 = vcmp.eq.f32.partialorder %v1189, 8.507059e+37
        %v1191 = vand.u32 %v1179, 2147483648
        %v1192 = vor.u32 1.1754944e-38, %v1191
        %v1193 = vsel %vm1190, %v1192, %v1188
        %v1194 = vmul.f32 1.0, %v1193
        %v1195 = vmul.f32 %v1172, %v1194
        %v1196 = vpack.c.bf16 %v1195, %v1195
        %v1197 = vld [vmem:[%s680] sm:$0xf]
        %v1198 = vld [vmem:[%s680 + $0x4] sm:$0xf]
        %v1199 = vld [vmem:[%s680 + $0x8] sm:$0xf]
        %v1200 = vld [vmem:[%s680 + $0xc] sm:$0xf]
        %v1201 = vld [vmem:[%s680 + $0x10] sm:$0xf]
        %v1202 = vld [vmem:[%s680 + $0x14] sm:$0xf]
        %v1203 = vld [vmem:[%s680 + $0x18] sm:$0xf]
        %v1204 = vld [vmem:[%s680 + $0x1c] sm:$0xf]
        %v1205 = vld [vmem:[%s680 + $0x20] sm:$0xf]
        %v1206 = vld [vmem:[%s680 + $0x24] sm:$0xf]
        %v1207 = vld [vmem:[%s680 + $0x28] sm:$0xf]
        %v1208 = vld [vmem:[%s680 + $0x2c] sm:$0xf]
        %v1209 = vld [vmem:[%s680 + $0x30] sm:$0xf]
        %v1210 = vld [vmem:[%s680 + $0x34] sm:$0xf]
        %v1211 = vld [vmem:[%s680 + $0x38] sm:$0xf]
        %v1212 = vld [vmem:[%s680 + $0x3c] sm:$0xf]
        %v1229 = vunpack.c.l.b16 %v1197
        %v1230 = vunpack.c.l.b16 %v1198
        %v1231 = vunpack.c.l.b16 %v1199
        %v1232 = vunpack.c.l.b16 %v1200
        %v1233 = vunpack.c.l.b16 %v1201
        %v1234 = vunpack.c.l.b16 %v1202
        %v1235 = vunpack.c.l.b16 %v1203
        %v1236 = vunpack.c.l.b16 %v1204
        %v1237 = vunpack.c.l.b16 %v1205
        %v1238 = vunpack.c.l.b16 %v1206
        %v1239 = vunpack.c.l.b16 %v1207
        %v1240 = vunpack.c.l.b16 %v1208
        %v1241 = vunpack.c.l.b16 %v1209
        %v1242 = vunpack.c.l.b16 %v1210
        %v1243 = vunpack.c.l.b16 %v1211
        %v1244 = vunpack.c.l.b16 %v1212
        %v1245 = vpack.c.b16 %v1230, %v1229
        %v1246 = vpack.c.b16 %v1232, %v1231
        %v1247 = vpack.c.b16 %v1234, %v1233
        %v1248 = vpack.c.b16 %v1236, %v1235
        %v1249 = vpack.c.b16 %v1238, %v1237
        %v1250 = vpack.c.b16 %v1240, %v1239
        %v1251 = vpack.c.b16 %v1242, %v1241
        %v1252 = vpack.c.b16 %v1244, %v1243
        %1261 = vmatpush.bf16.msra.mxu0 %v1252
        %1262 = vmatpush.bf16.msra.mxu0 %v1251
        %1263 = vmatpush.bf16.msra.mxu0 %v1250
        %1264 = vmatpush.bf16.msra.mxu0 %v1249
        %1265 = vmatpush.bf16.msra.mxu0 %v1248
        %1266 = vmatpush.bf16.msra.mxu0 %v1247
        %1267 = vmatpush.bf16.msra.mxu0 %v1246
        %1268 = vmatpush.bf16.msra.mxu0 %v1245
        %1269 = vmatmul.bf16.gmra.mxu0 %v1196
        %v1270 = vpop.f32.mrf.mxu0
        %v1271 = vadd.f32 0.0, %v1270
        %v1272 = vpop.f32.mrf.mxu0
        %1273 = vdwg.mxu0
        %v1274 = vld [vmem:[%s625] sm:$0xff]
        %v1275 = vadd.f32 %v1274, %v1271
        %1276 = vst.msk [vmem:[%s625] sm:$0xff] %vm1158, %v1275
        %s1277 = sand.u32 %s398, 1
        %s1278 = scalar_lea.sflag [#allocation4], %s1277
        %s1279 = sand.u32 %s398, 1
        %s1280 = smul.addr %s1279, 8
        %s1281 = scalar_lea.vmem [#allocation3], %s1280
        // Predicated region
        $region81: #{tpu_custom_call.1} parent=71 // pred_check
          %p1282 = pneg %p408
        $region82: #{tpu_custom_call.1} parent=71 // pred_check_branch
          %1284 = sbr.rel (%p1282) target = $region84
        $region83: #{tpu_custom_call.1} parent=71 // pred_region
          %1286 = vsyncadd %s1278, 0
          %s1287 = smul.addr %s32, 8
          %s1288 = scalar_lea.hbm %s13, %s1287
          %s1290 = sshll.u32 %s1281, 4
          %s1291 = int_to_ptr.vmem [resolvable:$true] %s1290
          %s1292 = sshll.u32 %s1288, 4
          %s1293 = int_to_ptr.hbm [resolvable:$true] %s1292
          %1295 = dma.vmem_to_hbm [thread:$0]  %s1291, 128, %s1293, %s1278
        $region84: #{tpu_custom_call.1} parent=71 // pred_fallthru
          _
      $region72: #{tpu_custom_call.1} parent=5 // pred_fallthru
        _
      %p1296 = scmp.le.s32.totalorder 2, %s22
      // Predicated region
      $region85: #{tpu_custom_call.1} parent=5 // pred_check
        %p1297 = pneg %p1296
      $region86: #{tpu_custom_call.1} parent=5 // pred_check_branch
        %1299 = sbr.rel (%p1297) target = $region88
      $region87: #{tpu_custom_call.1} parent=5 // pred_region
        %s1300 = ssub.s32 %s22, 2
        // Predicated region
        $region89: #{tpu_custom_call.1} parent=87 // pred_check
          %p1301 = pneg %p414
        $region90: #{tpu_custom_call.1} parent=87 // pred_check_branch
          %1303 = sbr.rel (%p1301) target = $region92
        $region91: #{tpu_custom_call.1} parent=87 // pred_region
          %s1304 = sand.u32 %s399, 1
          %s1305 = scalar_lea.sflag [#allocation4], %s1304
          %s1306 = sand.u32 %s399, 1
          %s1307 = smul.addr %s1306, 8
          %s1308 = scalar_lea.vmem [#allocation3], %s1307
          %1310 = dma.done %s1305, 128
        $region92: #{tpu_custom_call.1} parent=87 // pred_fallthru
          _
      $region88: #{tpu_custom_call.1} parent=5 // pred_fallthru
        _
    $region6: #{tpu_custom_call.1} parent=1 // loop_footer
      %s26 = sadd.s32 1, %s22
    $region7: #{tpu_custom_call.1} parent=1 // loop_footer_branch
      %21 = sbr.rel target = $region3
    $region8: #{tpu_custom_call.1} parent=1 // loop_exit
      _
    %1311 = vsyncpa [#allocation4], 1
    %s1312 = scalar_lea.sflag [#allocation4], 1
    %1313 = vsyncpa %s1312, 1

</llo_original>
